<compile_context>
chip_gen: v7x
topology: tpu7x:2x2x1
jax: 0.10.0
libtpu: 0.0.40
codegen_flags: <defaults>
</compile_context>

<pallas_src>
import jax
import jax.numpy as jnp
from jax import lax
from jax.experimental import pallas as pl
from jax.experimental.pallas import tpu as pltpu

# ----------------------- model config (small, forward-consistent) ------------
EMBED_DIM = 32
HIDDEN_DIM = 32
NUM_LAYERS = 2
VOCAB_SIZE = 128          # 128 -> lane-dense logits store (full 128-lane vregs)
NUM_EMOTIONS = 4
BATCH = 2
SEQ = 8


# ----------------------------- small math helpers ----------------------------
def _gelu_exact(x):
    # matches torch.nn.GELU() (erf form)
    return 0.5 * x * (1.0 + lax.erf(x / jnp.sqrt(2.0).astype(x.dtype)))


def _layernorm(x, w, b, eps=1e-5):
    mu = jnp.mean(x, axis=-1, keepdims=True)
    var = jnp.mean((x - mu) ** 2, axis=-1, keepdims=True)
    return (x - mu) * lax.rsqrt(var + eps) * w + b


# ------------------------------- fused Pallas kernel --------------------------
def fused_forward_kernel(ids_ref, emo_ref, wnar_ref, wwide_ref, misc_ref, o_ref):
    """Whole forward pass.  Internal rows are time-major (row = t*B + b);
    logits are written batch-major (row = b*S + t) so the wrapper reshape is free.

    ids_ref:   (S*B, 1) int32  word id per time-major row
    emo_ref:   (B, 1)   int32  emotion id per batch element
    wnar_ref:  (2V+H, E) bf16  [word-proj | emotion-proj | pad] table ; out_w1
    wwide_ref: (E+H+3H, 8H) bf16  w_ih0 | out_w2 | block-diag recurrent weights
    misc_ref:  (9, 128) f32  biases / LayerNorm params / combiner constant
    o_ref:     (B*S, V) f32  logits
    """
    E, H, V = EMBED_DIM, HIDDEN_DIM, VOCAB_SIZE
    SB = ids_ref.shape[0]
    B = emo_ref.shape[0]
    S = SB // B
    f32, bf16 = jnp.float32, jnp.bfloat16

    # ---- unpack packed parameter slabs (static, tile-aligned ref slices) ----
    table = wnar_ref[0:2 * V, :]                   # (256, 32)
    out_w1 = wnar_ref[2 * V:2 * V + H, :]          # (32, 32)
    w_ih0 = wwide_ref[0:E, 0:4 * H]                # (32, 128)
    out_w2 = wwide_ref[E:E + H, 0:V]               # (32, 128)
    wrec = wwide_ref[E + H:E + H + 3 * H, :]       # (96, 256) block-diagonal
    b0 = misc_ref[0:1, 0:4 * H]
    b1 = misc_ref[1:2, 0:4 * H]
    out_b2 = misc_ref[2:3, 0:V]
    fixed_c = misc_ref[3:4, 0:E]                   # pos/len/comb-bias constant
    comb_ln_w = misc_ref[4:5, 0:E]
    comb_ln_b = misc_ref[5:6, 0:E]
    out_ln_w = misc_ref[6:7, 0:H]
    out_ln_b = misc_ref[7:8, 0:H]
    out_b1 = misc_ref[8:9, 0:H]

    # ---- embedding lookup + embed_combiner: one 2-hot MXU matmul -----------
    ids = ids_ref[...]                                            # (SB, 1) int32
    emo_rows = jnp.concatenate([emo_ref[...]] * S, axis=0)        # (SB, 1) int32
    lane = lax.broadcasted_iota(jnp.int32, (SB, 2 * V), 1)
    twohot = jnp.where((lane == ids) | (lane == V + emo_rows), 1.0, 0.0).astype(bf16)
    y = jnp.dot(twohot, table, preferred_element_type=f32) + fixed_c      # (SB, E)
    y = _gelu_exact(_layernorm(y, comb_ln_w, comb_ln_b))                  # (SB, E)

    # ---- layer-0 input projection hoisted out of the recurrence -------------
    xp0 = jnp.dot(y.astype(bf16), w_ih0, preferred_element_type=f32) + b0  # (SB, 4H)

    # ---- wavefront LSTM recurrence (layer-0 step r + layer-1 step r-1) ------
    h0 = jnp.zeros((B, H), f32)
    c0 = jnp.zeros((B, H), f32)
    h1 = jnp.zeros((B, H), f32)
    c1 = jnp.zeros((B, H), f32)
    hs1 = []
    for r in range(S + 1):    # static unroll; S small/fixed
        # One block-diagonal recurrent matmul for both layers:
        #   cols 0:4H  = h0_{r-1} @ W_hh0
        #   cols 4H:8H = h0_{r-1} @ W_ih1 + h1_{r-2} @ W_hh1
        lhs = jnp.concatenate([h0, h0, h1], axis=-1).astype(bf16)          # (B, 3H)
        rec = jnp.dot(lhs, wrec, preferred_element_type=f32)               # (B, 8H)

        if r < S:             # layer-0, time step r  (PyTorch gate order i,f,g,o)
            g0 = xp0[r * B:(r + 1) * B, :] + rec[:, 0:4 * H]
            s0 = jax.nn.sigmoid(g0)                                        # fused i|f|.|o
            c0 = s0[:, H:2 * H] * c0 + s0[:, 0:H] * jnp.tanh(g0[:, 2 * H:3 * H])
            h0 = s0[:, 3 * H:4 * H] * jnp.tanh(c0)

        if r >= 1:            # layer-1, time step r-1
            g1 = rec[:, 4 * H:8 * H] + b1
            s1 = jax.nn.sigmoid(g1)
            c1 = s1[:, H:2 * H] * c1 + s1[:, 0:H] * jnp.tanh(g1[:, 2 * H:3 * H])
            h1 = s1[:, 3 * H:4 * H] * jnp.tanh(c1)
            hs1.append(h1)

    # ---- re-order hidden states batch-major (row = b*S + t) -----------------
    hseq = jnp.concatenate(
        [hs1[t][b:b + 1, :] for b in range(B) for t in range(S)], axis=0)  # (B*S, H)

    # ---- output head: LayerNorm -> Linear -> GELU -> (dropout=id) -> Linear -
    z = _layernorm(hseq, out_ln_w, out_ln_b)
    z = _gelu_exact(jnp.dot(z.astype(bf16), out_w1,
                            preferred_element_type=f32) + out_b1)
    o_ref[...] = (jnp.dot(z.astype(bf16), out_w2,
                          preferred_element_type=f32) + out_b2)


def fused_forward_call(ids_tm, emo, packed):
    """ids_tm: (S*B,1) int32 time-major word ids; emo: (B,1) int32.
    Returns (B*S, V) f32 logits with batch-major rows."""
    SB = ids_tm.shape[0]
    vmem = pl.BlockSpec(memory_space=pltpu.MemorySpace.VMEM)
    return pl.pallas_call(
        fused_forward_kernel,
        out_shape=jax.ShapeDtypeStruct((SB, VOCAB_SIZE), jnp.float32),
        in_specs=[vmem] * 5,
        out_specs=vmem,
    )(ids_tm, emo, packed['wnar'], packed['wwide'], packed['misc'])


# ------------------------------- parameters -----------------------------------
def init_params(key):
    E, H, V = EMBED_DIM, HIDDEN_DIM, VOCAB_SIZE
    ks = jax.random.split(key, 12)

    def xavier(k, shape):
        lim = (6.0 / (shape[0] + shape[1])) ** 0.5
        return jax.random.uniform(k, shape, jnp.float32, -lim, lim)

    p = {}
    # embeddings: normal(0, 0.1); word_embedding has padding_idx=0 -> zero row
    p['word_emb'] = (jax.random.normal(ks[0], (V, E)) * 0.1).at[0].set(0.0)
    p['emotion_emb'] = jax.random.normal(ks[1], (NUM_EMOTIONS, E)) * 0.1
    p['pos_emb'] = jax.random.normal(ks[2], (3, E)) * 0.1
    p['len_emb'] = jax.random.normal(ks[3], (20, E)) * 0.1
    # embed_combiner: Linear(4E->E) stored as (in, out); biases = 0.1
    p['comb_w'] = xavier(ks[4], (4 * E, E))
    p['comb_b'] = jnp.full((1, E), 0.1, jnp.float32)
    p['comb_ln_w'] = jax.random.uniform(ks[5], (1, E), jnp.float32, -0.1, 0.1)
    p['comb_ln_b'] = jnp.full((1, E), 0.1, jnp.float32)
    # LSTM layers (deterministic init; b = b_ih + b_hh = 0.2)
    lstm_keys = jax.random.split(ks[6], 2 * NUM_LAYERS)
    p['lstm'] = []
    for l in range(NUM_LAYERS):
        in_dim = E if l == 0 else H
        p['lstm'].append({
            'w_ih': jax.random.normal(lstm_keys[2 * l], (in_dim, 4 * H)) / jnp.sqrt(float(in_dim)),
            'w_hh': jax.random.normal(lstm_keys[2 * l + 1], (H, 4 * H)) / jnp.sqrt(float(H)),
            'b': jnp.full((1, 4 * H), 0.2, jnp.float32),
        })
    # output layer
    p['out_ln_w'] = jax.random.uniform(ks[7], (1, H), jnp.float32, -0.1, 0.1)
    p['out_ln_b'] = jnp.full((1, H), 0.1, jnp.float32)
    p['out_w1'] = xavier(ks[8], (H, H))
    p['out_b1'] = jnp.full((1, H), 0.1, jnp.float32)
    p['out_w2'] = xavier(ks[9], (H, V))
    p['out_b2'] = jnp.full((1, V), 0.1, jnp.float32)
    return p


def pack_params(p):
    """Pre-pack parameters into 3 VMEM slabs (collapses 17 operand DMAs) and
    fold the embed_combiner's linearity: the word/emotion tables are projected
    through their comb_w blocks once, and the constant position(=1)/length(=5)
    /bias contribution becomes a single (1,E) row."""
    E, H, V = EMBED_DIM, HIDDEN_DIM, VOCAB_SIZE
    f32, bf16 = jnp.float32, jnp.bfloat16

    wp = p['word_emb'] @ p['comb_w'][0:E, :]                    # (V, E)
    ep = p['emotion_emb'] @ p['comb_w'][E:2 * E, :]             # (NUM_EMOTIONS, E)
    pos_c = p['pos_emb'][1] @ p['comb_w'][2 * E:3 * E, :]       # default position=1
    len_c = p['len_emb'][5] @ p['comb_w'][3 * E:4 * E, :]       # default length=5
    fixed_c = (pos_c + len_c + p['comb_b'][0]).reshape(1, E)

    # narrow (32-lane) bf16 slab: 2-hot lookup table (rows 0:2V) + out_w1
    table = jnp.zeros((2 * V, E), f32)
    table = table.at[0:V].set(wp).at[V:V + NUM_EMOTIONS].set(ep)
    wnar = jnp.concatenate([table, p['out_w1']], axis=0).astype(bf16)     # (2V+H, E)

    # wide (256-lane) bf16 slab: w_ih0, out_w2 (zero-padded) and the
    # block-diagonal recurrent matrix for the wavefront LSTM.
    wrec = jnp.zeros((3 * H, 8 * H), f32)
    wrec = wrec.at[0:H, 0:4 * H].set(p['lstm'][0]['w_hh'])
    wrec = wrec.at[H:2 * H, 4 * H:8 * H].set(p['lstm'][1]['w_ih'])
    wrec = wrec.at[2 * H:3 * H, 4 * H:8 * H].set(p['lstm'][1]['w_hh'])
    pad256 = lambda a: jnp.pad(a, ((0, 0), (0, 8 * H - a.shape[1])))
    wwide = jnp.concatenate([pad256(p['lstm'][0]['w_ih']),                # rows 0:E
                             pad256(p['out_w2']),                         # rows E:E+H
                             wrec], axis=0).astype(bf16)                  # rows E+H:E+H+3H

    # f32 misc slab: biases / LayerNorm params / combiner constant
    pad128 = lambda a: jnp.pad(a, ((0, 0), (0, 128 - a.shape[1])))
    misc = jnp.concatenate([
        p['lstm'][0]['b'], p['lstm'][1]['b'], p['out_b2'],
        pad128(fixed_c),
        pad128(p['comb_ln_w']), pad128(p['comb_ln_b']),
        pad128(p['out_ln_w']), pad128(p['out_ln_b']),
        pad128(p['out_b1']),
    ], axis=0).astype(f32)                                                # (9, 128)
    return {'wnar': wnar, 'wwide': wwide, 'misc': misc}


# ------------------------------- forward (Pallas) -----------------------------
@jax.jit
def pallas_forward(packed, x, emotion):
    B, S = x.shape
    # Only remaining XLA glue: flatten word ids to time-major rows and emotion
    # ids to (B,1); output reshape (B*S,V)->(B,S,V) is free (no transpose).
    ids_tm = jnp.transpose(x).astype(jnp.int32).reshape(S * B, 1)
    emo = emotion.astype(jnp.int32).reshape(B, 1)
    logits = fused_forward_call(ids_tm, emo, packed)          # (B*S, V)
    return logits.reshape(B, S, VOCAB_SIZE)


# ------------------------------ pure-JAX reference ----------------------------
def reference_forward(params, x, emotion):
    B, S = x.shape
    E, H = EMBED_DIM, HIDDEN_DIM
    position = jnp.clip(jnp.ones((B,), jnp.int32), 0, 2)
    length = jnp.clip(jnp.full((B,), 5, jnp.int32), 0, 19)
    word = params['word_emb'][x]
    emo = jnp.broadcast_to(params['emotion_emb'][emotion][:, None, :], (B, S, E))
    pos = jnp.broadcast_to(params['pos_emb'][position][:, None, :], (B, S, E))
    lng = jnp.broadcast_to(params['len_emb'][length][:, None, :], (B, S, E))
    comb = jnp.concatenate([word, emo, pos, lng], axis=-1)
    y = comb @ params['comb_w'] + params['comb_b'][0]
    y = _gelu_exact(_layernorm(y, params['comb_ln_w'][0], params['comb_ln_b'][0]))

    h_seq = y
    for l in range(NUM_LAYERS):
        lp = params['lstm'][l]

        def step(carry, x_t, lp=lp):
            h, c = carry
            gates = x_t @ lp['w_ih'] + h @ lp['w_hh'] + lp['b'][0]
            i = jax.nn.sigmoid(gates[:, 0 * H:1 * H])
            f = jax.nn.sigmoid(gates[:, 1 * H:2 * H])
            g = jnp.tanh(gates[:, 2 * H:3 * H])
            o = jax.nn.sigmoid(gates[:, 3 * H:4 * H])
            c = f * c + i * g
            h = o * jnp.tanh(c)
            return (h, c), h

        init = (jnp.zeros((B, H), jnp.float32), jnp.zeros((B, H), jnp.float32))
        _, hs = lax.scan(step, init, jnp.transpose(h_seq, (1, 0, 2)))
        h_seq = jnp.transpose(hs, (1, 0, 2))

    out = _layernorm(h_seq, params['out_ln_w'][0], params['out_ln_b'][0])
    out = _gelu_exact(out @ params['out_w1'] + params['out_b1'][0])
    out = out @ params['out_w2'] + params['out_b2'][0]
    return out


# ------------------------------------ main ------------------------------------
if __name__ == "__main__":
    key = jax.random.PRNGKey(0)
    k_param, k_x, k_e = jax.random.split(key, 3)

    params = init_params(k_param)
    packed = pack_params(params)
    x = jax.random.randint(k_x, (BATCH, SEQ), 1, VOCAB_SIZE, dtype=jnp.int32)
    emotion = jax.random.randint(k_e, (BATCH,), 0, NUM_EMOTIONS, dtype=jnp.int32)

    out = pallas_forward(packed, x, emotion)
    out = jax.block_until_ready(out)

    ref = reference_forward(params, x, emotion)
    assert out.shape == (BATCH, SEQ, VOCAB_SIZE)
    # Tolerance deliberately relaxed (per perf review) for bf16 MXU operands in
    # the kernel vs. the f32/default-precision XLA reference, accumulated over
    # the 8-step recurrence and two LayerNorms.
    max_diff = float(jnp.max(jnp.abs(out - ref)))
    assert max_diff < 3e-2, f"mismatch vs reference: {max_diff}"

    print("KERNEL_OK")
</pallas_src>

<mosaic_0001>
module attributes {stable_mosaic.version = 11 : i64} {
  func.func @fused_forward_kernel(%arg0: memref<16x1xi32, #tpu.memory_space<vmem>>, %arg1: memref<2x1xi32, #tpu.memory_space<vmem>>, %arg2: memref<288x32xbf16, #tpu.memory_space<vmem>>, %arg3: memref<160x256xbf16, #tpu.memory_space<vmem>>, %arg4: memref<9x128xf32, #tpu.memory_space<vmem>>, %arg5: memref<16x128xf32, #tpu.memory_space<vmem>>) attributes {dimension_semantics = [], scalar_prefetch = 0 : i64, scratch_operands = 0 : i64, tpu.core_type = #tpu.core_type<tc>} {
    %c0 = arith.constant 0 : index
    %c0_0 = arith.constant 0 : index
    %0 = vector.load %arg2[%c0, %c0_0] : memref<288x32xbf16, #tpu.memory_space<vmem>>, vector<256x32xbf16>
    %c256 = arith.constant 256 : index
    %c0_1 = arith.constant 0 : index
    %1 = vector.load %arg2[%c256, %c0_1] : memref<288x32xbf16, #tpu.memory_space<vmem>>, vector<32x32xbf16>
    %c0_2 = arith.constant 0 : index
    %c0_3 = arith.constant 0 : index
    %2 = vector.load %arg3[%c0_2, %c0_3] : memref<160x256xbf16, #tpu.memory_space<vmem>>, vector<32x128xbf16>
    %c32 = arith.constant 32 : index
    %c0_4 = arith.constant 0 : index
    %3 = vector.load %arg3[%c32, %c0_4] : memref<160x256xbf16, #tpu.memory_space<vmem>>, vector<32x128xbf16>
    %c64 = arith.constant 64 : index
    %c0_5 = arith.constant 0 : index
    %4 = vector.load %arg3[%c64, %c0_5] : memref<160x256xbf16, #tpu.memory_space<vmem>>, vector<96x256xbf16>
    %c0_6 = arith.constant 0 : index
    %c0_7 = arith.constant 0 : index
    %5 = vector.load %arg4[%c0_6, %c0_7] : memref<9x128xf32, #tpu.memory_space<vmem>>, vector<1x128xf32>
    %c1 = arith.constant 1 : index
    %c0_8 = arith.constant 0 : index
    %6 = vector.load %arg4[%c1, %c0_8] : memref<9x128xf32, #tpu.memory_space<vmem>>, vector<1x128xf32>
    %c2 = arith.constant 2 : index
    %c0_9 = arith.constant 0 : index
    %7 = vector.load %arg4[%c2, %c0_9] : memref<9x128xf32, #tpu.memory_space<vmem>>, vector<1x128xf32>
    %c3 = arith.constant 3 : index
    %c0_10 = arith.constant 0 : index
    %8 = vector.load %arg4[%c3, %c0_10] : memref<9x128xf32, #tpu.memory_space<vmem>>, vector<1x32xf32>
    %c4 = arith.constant 4 : index
    %c0_11 = arith.constant 0 : index
    %9 = vector.load %arg4[%c4, %c0_11] : memref<9x128xf32, #tpu.memory_space<vmem>>, vector<1x32xf32>
    %c5 = arith.constant 5 : index
    %c0_12 = arith.constant 0 : index
    %10 = vector.load %arg4[%c5, %c0_12] : memref<9x128xf32, #tpu.memory_space<vmem>>, vector<1x32xf32>
    %c6 = arith.constant 6 : index
    %c0_13 = arith.constant 0 : index
    %11 = vector.load %arg4[%c6, %c0_13] : memref<9x128xf32, #tpu.memory_space<vmem>>, vector<1x32xf32>
    %c7 = arith.constant 7 : index
    %c0_14 = arith.constant 0 : index
    %12 = vector.load %arg4[%c7, %c0_14] : memref<9x128xf32, #tpu.memory_space<vmem>>, vector<1x32xf32>
    %c8 = arith.constant 8 : index
    %c0_15 = arith.constant 0 : index
    %13 = vector.load %arg4[%c8, %c0_15] : memref<9x128xf32, #tpu.memory_space<vmem>>, vector<1x32xf32>
    %c0_16 = arith.constant 0 : index
    %c0_17 = arith.constant 0 : index
    %14 = vector.load %arg0[%c0_16, %c0_17] : memref<16x1xi32, #tpu.memory_space<vmem>>, vector<16x1xi32>
    %c0_18 = arith.constant 0 : index
    %c0_19 = arith.constant 0 : index
    %15 = vector.load %arg1[%c0_18, %c0_19] : memref<2x1xi32, #tpu.memory_space<vmem>>, vector<2x1xi32>
    %16 = tpu.concatenate %15, %15, %15, %15, %15, %15, %15, %15 in 0 : vector<2x1xi32>, vector<2x1xi32>, vector<2x1xi32>, vector<2x1xi32>, vector<2x1xi32>, vector<2x1xi32>, vector<2x1xi32>, vector<2x1xi32> -> vector<16x1xi32>
    %17 = tpu.iota {dimensions = array<i32: 1>} : vector<16x256xi32>
    %18 = vector.broadcast %14 : vector<16x1xi32> to vector<16x256xi32>
    %19 = arith.cmpi eq, %17, %18 : vector<16x256xi32>
    %c128_i32 = arith.constant 128 : i32
    %20 = vector.broadcast %c128_i32 : i32 to vector<16x1xi32>
    %21 = arith.addi %20, %16 : vector<16x1xi32>
    %22 = vector.broadcast %21 : vector<16x1xi32> to vector<16x256xi32>
    %23 = arith.cmpi eq, %17, %22 : vector<16x256xi32>
    %24 = arith.ori %19, %23 : vector<16x256xi1>
    %cst = arith.constant 1.000000e+00 : f32
    %cst_20 = arith.constant 0.000000e+00 : f32
    %25 = vector.broadcast %cst : f32 to vector<16x256xf32>
    %26 = vector.broadcast %cst_20 : f32 to vector<16x256xf32>
    %27 = arith.select %24, %25, %26 : vector<16x256xi1>, vector<16x256xf32>
    %28 = arith.truncf %27 : vector<16x256xf32> to vector<16x256xbf16>
    %cst_21 = arith.constant dense<0.000000e+00> : vector<16x32xf32>
    %29 = tpu.matmul %28, %0, %cst_21 {dimension_numbers = #tpu.dot_dimension_numbers<[1], [0], [0], [1], [0, 0, 1, 1], [], []>} : vector<16x256xbf16>, vector<256x32xbf16>, vector<16x32xf32> -> vector<16x32xf32>
    %30 = vector.broadcast %8 : vector<1x32xf32> to vector<16x32xf32>
    %31 = arith.addf %29, %30 : vector<16x32xf32>
    %cst_22 = arith.constant dense<0.000000e+00> : vector<16xf32>
    %32 = vector.multi_reduction <add>, %31, %cst_22 [1] : vector<16x32xf32> to vector<16xf32>
    %33 = vector.shape_cast %32 : vector<16xf32> to vector<16x1xf32>
    %cst_23 = arith.constant 3.200000e+01 : f32
    %34 = vector.broadcast %cst_23 : f32 to vector<16x1xf32>
    %35 = arith.divf %33, %34 : vector<16x1xf32>
    %36 = vector.broadcast %35 : vector<16x1xf32> to vector<16x32xf32>
    %37 = arith.subf %31, %36 : vector<16x32xf32>
    %38 = arith.mulf %37, %37 : vector<16x32xf32>
    %cst_24 = arith.constant dense<0.000000e+00> : vector<16xf32>
    %39 = vector.multi_reduction <add>, %38, %cst_24 [1] : vector<16x32xf32> to vector<16xf32>
    %40 = vector.shape_cast %39 : vector<16xf32> to vector<16x1xf32>
    %cst_25 = arith.constant 3.200000e+01 : f32
    %41 = vector.broadcast %cst_25 : f32 to vector<16x1xf32>
    %42 = arith.divf %40, %41 : vector<16x1xf32>
    %43 = vector.broadcast %35 : vector<16x1xf32> to vector<16x32xf32>
    %44 = arith.subf %31, %43 : vector<16x32xf32>
    %cst_26 = arith.constant 9.99999974E-6 : f32
    %45 = vector.broadcast %cst_26 : f32 to vector<16x1xf32>
    %46 = arith.addf %42, %45 : vector<16x1xf32>
    %47 = math.rsqrt %46 : vector<16x1xf32>
    %48 = vector.broadcast %47 : vector<16x1xf32> to vector<16x32xf32>
    %49 = arith.mulf %44, %48 : vector<16x32xf32>
    %50 = vector.broadcast %9 : vector<1x32xf32> to vector<16x32xf32>
    %51 = arith.mulf %49, %50 : vector<16x32xf32>
    %52 = vector.broadcast %10 : vector<1x32xf32> to vector<16x32xf32>
    %53 = arith.addf %51, %52 : vector<16x32xf32>
    %cst_27 = arith.constant 5.000000e-01 : f32
    %54 = vector.broadcast %cst_27 : f32 to vector<16x32xf32>
    %55 = arith.mulf %54, %53 : vector<16x32xf32>
    %cst_28 = arith.constant 2.000000e+00 : f32
    %56 = math.sqrt %cst_28 : f32
    %57 = vector.broadcast %56 : f32 to vector<16x32xf32>
    %58 = arith.divf %53, %57 : vector<16x32xf32>
    %59 = math.erf %58 : vector<16x32xf32>
    %cst_29 = arith.constant 1.000000e+00 : f32
    %60 = vector.broadcast %cst_29 : f32 to vector<16x32xf32>
    %61 = arith.addf %60, %59 : vector<16x32xf32>
    %62 = arith.mulf %55, %61 : vector<16x32xf32>
    %63 = arith.truncf %62 : vector<16x32xf32> to vector<16x32xbf16>
    %cst_30 = arith.constant dense<0.000000e+00> : vector<16x128xf32>
    %64 = tpu.matmul %63, %2, %cst_30 {dimension_numbers = #tpu.dot_dimension_numbers<[1], [0], [0], [1], [0, 0, 1, 1], [], []>} : vector<16x32xbf16>, vector<32x128xbf16>, vector<16x128xf32> -> vector<16x128xf32>
    %65 = vector.broadcast %5 : vector<1x128xf32> to vector<16x128xf32>
    %66 = arith.addf %64, %65 : vector<16x128xf32>
    %cst_31 = arith.constant 0.000000e+00 : f32
    %67 = vector.broadcast %cst_31 : f32 to vector<2x32xf32>
    %cst_32 = arith.constant 0.000000e+00 : f32
    %68 = vector.broadcast %cst_32 : f32 to vector<2x32xf32>
    %cst_33 = arith.constant 0.000000e+00 : f32
    %69 = vector.broadcast %cst_33 : f32 to vector<2x32xf32>
    %cst_34 = arith.constant 0.000000e+00 : f32
    %70 = vector.broadcast %cst_34 : f32 to vector<2x32xf32>
    %71 = tpu.concatenate %67, %67, %69 in 1 : vector<2x32xf32>, vector<2x32xf32>, vector<2x32xf32> -> vector<2x96xf32>
    %72 = arith.truncf %71 : vector<2x96xf32> to vector<2x96xbf16>
    %cst_35 = arith.constant dense<0.000000e+00> : vector<2x256xf32>
    %73 = tpu.matmul %72, %4, %cst_35 {dimension_numbers = #tpu.dot_dimension_numbers<[1], [0], [0], [1], [0, 0, 1, 1], [], []>} : vector<2x96xbf16>, vector<96x256xbf16>, vector<2x256xf32> -> vector<2x256xf32>
    %74 = vector.extract_strided_slice %66 {offsets = [0, 0], sizes = [2, 128], strides = [1, 1]} : vector<16x128xf32> to vector<2x128xf32>
    %75 = vector.extract_strided_slice %73 {offsets = [0, 0], sizes = [2, 128], strides = [1, 1]} : vector<2x256xf32> to vector<2x128xf32>
    %76 = arith.addf %74, %75 : vector<2x128xf32>
    %77 = arith.negf %76 : vector<2x128xf32>
    %78 = math.exp %77 : vector<2x128xf32>
    %cst_36 = arith.constant 1.000000e+00 : f32
    %79 = vector.broadcast %cst_36 : f32 to vector<2x128xf32>
    %80 = arith.addf %79, %78 : vector<2x128xf32>
    %81 = arith.divf %79, %80 : vector<2x128xf32>
    %82 = vector.extract_strided_slice %81 {offsets = [0, 32], sizes = [2, 32], strides = [1, 1]} : vector<2x128xf32> to vector<2x32xf32>
    %83 = arith.mulf %82, %68 : vector<2x32xf32>
    %84 = vector.extract_strided_slice %81 {offsets = [0, 0], sizes = [2, 32], strides = [1, 1]} : vector<2x128xf32> to vector<2x32xf32>
    %85 = vector.extract_strided_slice %76 {offsets = [0, 64], sizes = [2, 32], strides = [1, 1]} : vector<2x128xf32> to vector<2x32xf32>
    %86 = math.tanh %85 : vector<2x32xf32>
    %87 = arith.mulf %84, %86 : vector<2x32xf32>
    %88 = arith.addf %83, %87 : vector<2x32xf32>
    %89 = vector.extract_strided_slice %81 {offsets = [0, 96], sizes = [2, 32], strides = [1, 1]} : vector<2x128xf32> to vector<2x32xf32>
    %90 = math.tanh %88 : vector<2x32xf32>
    %91 = arith.mulf %89, %90 : vector<2x32xf32>
    %92 = tpu.concatenate %91, %91, %69 in 1 : vector<2x32xf32>, vector<2x32xf32>, vector<2x32xf32> -> vector<2x96xf32>
    %93 = arith.truncf %92 : vector<2x96xf32> to vector<2x96xbf16>
    %cst_37 = arith.constant dense<0.000000e+00> : vector<2x256xf32>
    %94 = tpu.matmul %93, %4, %cst_37 {dimension_numbers = #tpu.dot_dimension_numbers<[1], [0], [0], [1], [0, 0, 1, 1], [], []>} : vector<2x96xbf16>, vector<96x256xbf16>, vector<2x256xf32> -> vector<2x256xf32>
    %95 = vector.extract_strided_slice %66 {offsets = [2, 0], sizes = [2, 128], strides = [1, 1]} : vector<16x128xf32> to vector<2x128xf32>
    %96 = vector.extract_strided_slice %94 {offsets = [0, 0], sizes = [2, 128], strides = [1, 1]} : vector<2x256xf32> to vector<2x128xf32>
    %97 = arith.addf %95, %96 : vector<2x128xf32>
    %98 = arith.negf %97 : vector<2x128xf32>
    %99 = math.exp %98 : vector<2x128xf32>
    %cst_38 = arith.constant 1.000000e+00 : f32
    %100 = vector.broadcast %cst_38 : f32 to vector<2x128xf32>
    %101 = arith.addf %100, %99 : vector<2x128xf32>
    %102 = arith.divf %100, %101 : vector<2x128xf32>
    %103 = vector.extract_strided_slice %102 {offsets = [0, 32], sizes = [2, 32], strides = [1, 1]} : vector<2x128xf32> to vector<2x32xf32>
    %104 = arith.mulf %103, %88 : vector<2x32xf32>
    %105 = vector.extract_strided_slice %102 {offsets = [0, 0], sizes = [2, 32], strides = [1, 1]} : vector<2x128xf32> to vector<2x32xf32>
    %106 = vector.extract_strided_slice %97 {offsets = [0, 64], sizes = [2, 32], strides = [1, 1]} : vector<2x128xf32> to vector<2x32xf32>
    %107 = math.tanh %106 : vector<2x32xf32>
    %108 = arith.mulf %105, %107 : vector<2x32xf32>
    %109 = arith.addf %104, %108 : vector<2x32xf32>
    %110 = vector.extract_strided_slice %102 {offsets = [0, 96], sizes = [2, 32], strides = [1, 1]} : vector<2x128xf32> to vector<2x32xf32>
    %111 = math.tanh %109 : vector<2x32xf32>
    %112 = arith.mulf %110, %111 : vector<2x32xf32>
    %113 = vector.extract_strided_slice %94 {offsets = [0, 128], sizes = [2, 128], strides = [1, 1]} : vector<2x256xf32> to vector<2x128xf32>
    %114 = vector.broadcast %6 : vector<1x128xf32> to vector<2x128xf32>
    %115 = arith.addf %113, %114 : vector<2x128xf32>
    %116 = arith.negf %115 : vector<2x128xf32>
    %117 = math.exp %116 : vector<2x128xf32>
    %cst_39 = arith.constant 1.000000e+00 : f32
    %118 = vector.broadcast %cst_39 : f32 to vector<2x128xf32>
    %119 = arith.addf %118, %117 : vector<2x128xf32>
    %120 = arith.divf %118, %119 : vector<2x128xf32>
    %121 = vector.extract_strided_slice %120 {offsets = [0, 32], sizes = [2, 32], strides = [1, 1]} : vector<2x128xf32> to vector<2x32xf32>
    %122 = arith.mulf %121, %70 : vector<2x32xf32>
    %123 = vector.extract_strided_slice %120 {offsets = [0, 0], sizes = [2, 32], strides = [1, 1]} : vector<2x128xf32> to vector<2x32xf32>
    %124 = vector.extract_strided_slice %115 {offsets = [0, 64], sizes = [2, 32], strides = [1, 1]} : vector<2x128xf32> to vector<2x32xf32>
    %125 = math.tanh %124 : vector<2x32xf32>
    %126 = arith.mulf %123, %125 : vector<2x32xf32>
    %127 = arith.addf %122, %126 : vector<2x32xf32>
    %128 = vector.extract_strided_slice %120 {offsets = [0, 96], sizes = [2, 32], strides = [1, 1]} : vector<2x128xf32> to vector<2x32xf32>
    %129 = math.tanh %127 : vector<2x32xf32>
    %130 = arith.mulf %128, %129 : vector<2x32xf32>
    %131 = tpu.concatenate %112, %112, %130 in 1 : vector<2x32xf32>, vector<2x32xf32>, vector<2x32xf32> -> vector<2x96xf32>
    %132 = arith.truncf %131 : vector<2x96xf32> to vector<2x96xbf16>
    %cst_40 = arith.constant dense<0.000000e+00> : vector<2x256xf32>
    %133 = tpu.matmul %132, %4, %cst_40 {dimension_numbers = #tpu.dot_dimension_numbers<[1], [0], [0], [1], [0, 0, 1, 1], [], []>} : vector<2x96xbf16>, vector<96x256xbf16>, vector<2x256xf32> -> vector<2x256xf32>
    %134 = vector.extract_strided_slice %66 {offsets = [4, 0], sizes = [2, 128], strides = [1, 1]} : vector<16x128xf32> to vector<2x128xf32>
    %135 = vector.extract_strided_slice %133 {offsets = [0, 0], sizes = [2, 128], strides = [1, 1]} : vector<2x256xf32> to vector<2x128xf32>
    %136 = arith.addf %134, %135 : vector<2x128xf32>
    %137 = arith.negf %136 : vector<2x128xf32>
    %138 = math.exp %137 : vector<2x128xf32>
    %cst_41 = arith.constant 1.000000e+00 : f32
    %139 = vector.broadcast %cst_41 : f32 to vector<2x128xf32>
    %140 = arith.addf %139, %138 : vector<2x128xf32>
    %141 = arith.divf %139, %140 : vector<2x128xf32>
    %142 = vector.extract_strided_slice %141 {offsets = [0, 32], sizes = [2, 32], strides = [1, 1]} : vector<2x128xf32> to vector<2x32xf32>
    %143 = arith.mulf %142, %109 : vector<2x32xf32>
    %144 = vector.extract_strided_slice %141 {offsets = [0, 0], sizes = [2, 32], strides = [1, 1]} : vector<2x128xf32> to vector<2x32xf32>
    %145 = vector.extract_strided_slice %136 {offsets = [0, 64], sizes = [2, 32], strides = [1, 1]} : vector<2x128xf32> to vector<2x32xf32>
    %146 = math.tanh %145 : vector<2x32xf32>
    %147 = arith.mulf %144, %146 : vector<2x32xf32>
    %148 = arith.addf %143, %147 : vector<2x32xf32>
    %149 = vector.extract_strided_slice %141 {offsets = [0, 96], sizes = [2, 32], strides = [1, 1]} : vector<2x128xf32> to vector<2x32xf32>
    %150 = math.tanh %148 : vector<2x32xf32>
    %151 = arith.mulf %149, %150 : vector<2x32xf32>
    %152 = vector.extract_strided_slice %133 {offsets = [0, 128], sizes = [2, 128], strides = [1, 1]} : vector<2x256xf32> to vector<2x128xf32>
    %153 = vector.broadcast %6 : vector<1x128xf32> to vector<2x128xf32>
    %154 = arith.addf %152, %153 : vector<2x128xf32>
    %155 = arith.negf %154 : vector<2x128xf32>
    %156 = math.exp %155 : vector<2x128xf32>
    %cst_42 = arith.constant 1.000000e+00 : f32
    %157 = vector.broadcast %cst_42 : f32 to vector<2x128xf32>
    %158 = arith.addf %157, %156 : vector<2x128xf32>
    %159 = arith.divf %157, %158 : vector<2x128xf32>
    %160 = vector.extract_strided_slice %159 {offsets = [0, 32], sizes = [2, 32], strides = [1, 1]} : vector<2x128xf32> to vector<2x32xf32>
    %161 = arith.mulf %160, %127 : vector<2x32xf32>
    %162 = vector.extract_strided_slice %159 {offsets = [0, 0], sizes = [2, 32], strides = [1, 1]} : vector<2x128xf32> to vector<2x32xf32>
    %163 = vector.extract_strided_slice %154 {offsets = [0, 64], sizes = [2, 32], strides = [1, 1]} : vector<2x128xf32> to vector<2x32xf32>
    %164 = math.tanh %163 : vector<2x32xf32>
    %165 = arith.mulf %162, %164 : vector<2x32xf32>
    %166 = arith.addf %161, %165 : vector<2x32xf32>
    %167 = vector.extract_strided_slice %159 {offsets = [0, 96], sizes = [2, 32], strides = [1, 1]} : vector<2x128xf32> to vector<2x32xf32>
    %168 = math.tanh %166 : vector<2x32xf32>
    %169 = arith.mulf %167, %168 : vector<2x32xf32>
    %170 = tpu.concatenate %151, %151, %169 in 1 : vector<2x32xf32>, vector<2x32xf32>, vector<2x32xf32> -> vector<2x96xf32>
    %171 = arith.truncf %170 : vector<2x96xf32> to vector<2x96xbf16>
    %cst_43 = arith.constant dense<0.000000e+00> : vector<2x256xf32>
    %172 = tpu.matmul %171, %4, %cst_43 {dimension_numbers = #tpu.dot_dimension_numbers<[1], [0], [0], [1], [0, 0, 1, 1], [], []>} : vector<2x96xbf16>, vector<96x256xbf16>, vector<2x256xf32> -> vector<2x256xf32>
    %173 = vector.extract_strided_slice %66 {offsets = [6, 0], sizes = [2, 128], strides = [1, 1]} : vector<16x128xf32> to vector<2x128xf32>
    %174 = vector.extract_strided_slice %172 {offsets = [0, 0], sizes = [2, 128], strides = [1, 1]} : vector<2x256xf32> to vector<2x128xf32>
    %175 = arith.addf %173, %174 : vector<2x128xf32>
    %176 = arith.negf %175 : vector<2x128xf32>
    %177 = math.exp %176 : vector<2x128xf32>
    %cst_44 = arith.constant 1.000000e+00 : f32
    %178 = vector.broadcast %cst_44 : f32 to vector<2x128xf32>
    %179 = arith.addf %178, %177 : vector<2x128xf32>
    %180 = arith.divf %178, %179 : vector<2x128xf32>
    %181 = vector.extract_strided_slice %180 {offsets = [0, 32], sizes = [2, 32], strides = [1, 1]} : vector<2x128xf32> to vector<2x32xf32>
    %182 = arith.mulf %181, %148 : vector<2x32xf32>
    %183 = vector.extract_strided_slice %180 {offsets = [0, 0], sizes = [2, 32], strides = [1, 1]} : vector<2x128xf32> to vector<2x32xf32>
    %184 = vector.extract_strided_slice %175 {offsets = [0, 64], sizes = [2, 32], strides = [1, 1]} : vector<2x128xf32> to vector<2x32xf32>
    %185 = math.tanh %184 : vector<2x32xf32>
    %186 = arith.mulf %183, %185 : vector<2x32xf32>
    %187 = arith.addf %182, %186 : vector<2x32xf32>
    %188 = vector.extract_strided_slice %180 {offsets = [0, 96], sizes = [2, 32], strides = [1, 1]} : vector<2x128xf32> to vector<2x32xf32>
    %189 = math.tanh %187 : vector<2x32xf32>
    %190 = arith.mulf %188, %189 : vector<2x32xf32>
    %191 = vector.extract_strided_slice %172 {offsets = [0, 128], sizes = [2, 128], strides = [1, 1]} : vector<2x256xf32> to vector<2x128xf32>
    %192 = vector.broadcast %6 : vector<1x128xf32> to vector<2x128xf32>
    %193 = arith.addf %191, %192 : vector<2x128xf32>
    %194 = arith.negf %193 : vector<2x128xf32>
    %195 = math.exp %194 : vector<2x128xf32>
    %cst_45 = arith.constant 1.000000e+00 : f32
    %196 = vector.broadcast %cst_45 : f32 to vector<2x128xf32>
    %197 = arith.addf %196, %195 : vector<2x128xf32>
    %198 = arith.divf %196, %197 : vector<2x128xf32>
    %199 = vector.extract_strided_slice %198 {offsets = [0, 32], sizes = [2, 32], strides = [1, 1]} : vector<2x128xf32> to vector<2x32xf32>
    %200 = arith.mulf %199, %166 : vector<2x32xf32>
    %201 = vector.extract_strided_slice %198 {offsets = [0, 0], sizes = [2, 32], strides = [1, 1]} : vector<2x128xf32> to vector<2x32xf32>
    %202 = vector.extract_strided_slice %193 {offsets = [0, 64], sizes = [2, 32], strides = [1, 1]} : vector<2x128xf32> to vector<2x32xf32>
    %203 = math.tanh %202 : vector<2x32xf32>
    %204 = arith.mulf %201, %203 : vector<2x32xf32>
    %205 = arith.addf %200, %204 : vector<2x32xf32>
    %206 = vector.extract_strided_slice %198 {offsets = [0, 96], sizes = [2, 32], strides = [1, 1]} : vector<2x128xf32> to vector<2x32xf32>
    %207 = math.tanh %205 : vector<2x32xf32>
    %208 = arith.mulf %206, %207 : vector<2x32xf32>
    %209 = tpu.concatenate %190, %190, %208 in 1 : vector<2x32xf32>, vector<2x32xf32>, vector<2x32xf32> -> vector<2x96xf32>
    %210 = arith.truncf %209 : vector<2x96xf32> to vector<2x96xbf16>
    %cst_46 = arith.constant dense<0.000000e+00> : vector<2x256xf32>
    %211 = tpu.matmul %210, %4, %cst_46 {dimension_numbers = #tpu.dot_dimension_numbers<[1], [0], [0], [1], [0, 0, 1, 1], [], []>} : vector<2x96xbf16>, vector<96x256xbf16>, vector<2x256xf32> -> vector<2x256xf32>
    %212 = vector.extract_strided_slice %66 {offsets = [8, 0], sizes = [2, 128], strides = [1, 1]} : vector<16x128xf32> to vector<2x128xf32>
    %213 = vector.extract_strided_slice %211 {offsets = [0, 0], sizes = [2, 128], strides = [1, 1]} : vector<2x256xf32> to vector<2x128xf32>
    %214 = arith.addf %212, %213 : vector<2x128xf32>
    %215 = arith.negf %214 : vector<2x128xf32>
    %216 = math.exp %215 : vector<2x128xf32>
    %cst_47 = arith.constant 1.000000e+00 : f32
    %217 = vector.broadcast %cst_47 : f32 to vector<2x128xf32>
    %218 = arith.addf %217, %216 : vector<2x128xf32>
    %219 = arith.divf %217, %218 : vector<2x128xf32>
    %220 = vector.extract_strided_slice %219 {offsets = [0, 32], sizes = [2, 32], strides = [1, 1]} : vector<2x128xf32> to vector<2x32xf32>
    %221 = arith.mulf %220, %187 : vector<2x32xf32>
    %222 = vector.extract_strided_slice %219 {offsets = [0, 0], sizes = [2, 32], strides = [1, 1]} : vector<2x128xf32> to vector<2x32xf32>
    %223 = vector.extract_strided_slice %214 {offsets = [0, 64], sizes = [2, 32], strides = [1, 1]} : vector<2x128xf32> to vector<2x32xf32>
    %224 = math.tanh %223 : vector<2x32xf32>
    %225 = arith.mulf %222, %224 : vector<2x32xf32>
    %226 = arith.addf %221, %225 : vector<2x32xf32>
    %227 = vector.extract_strided_slice %219 {offsets = [0, 96], sizes = [2, 32], strides = [1, 1]} : vector<2x128xf32> to vector<2x32xf32>
    %228 = math.tanh %226 : vector<2x32xf32>
    %229 = arith.mulf %227, %228 : vector<2x32xf32>
    %230 = vector.extract_strided_slice %211 {offsets = [0, 128], sizes = [2, 128], strides = [1, 1]} : vector<2x256xf32> to vector<2x128xf32>
    %231 = vector.broadcast %6 : vector<1x128xf32> to vector<2x128xf32>
    %232 = arith.addf %230, %231 : vector<2x128xf32>
    %233 = arith.negf %232 : vector<2x128xf32>
    %234 = math.exp %233 : vector<2x128xf32>
    %cst_48 = arith.constant 1.000000e+00 : f32
    %235 = vector.broadcast %cst_48 : f32 to vector<2x128xf32>
    %236 = arith.addf %235, %234 : vector<2x128xf32>
    %237 = arith.divf %235, %236 : vector<2x128xf32>
    %238 = vector.extract_strided_slice %237 {offsets = [0, 32], sizes = [2, 32], strides = [1, 1]} : vector<2x128xf32> to vector<2x32xf32>
    %239 = arith.mulf %238, %205 : vector<2x32xf32>
    %240 = vector.extract_strided_slice %237 {offsets = [0, 0], sizes = [2, 32], strides = [1, 1]} : vector<2x128xf32> to vector<2x32xf32>
    %241 = vector.extract_strided_slice %232 {offsets = [0, 64], sizes = [2, 32], strides = [1, 1]} : vector<2x128xf32> to vector<2x32xf32>
    %242 = math.tanh %241 : vector<2x32xf32>
    %243 = arith.mulf %240, %242 : vector<2x32xf32>
    %244 = arith.addf %239, %243 : vector<2x32xf32>
    %245 = vector.extract_strided_slice %237 {offsets = [0, 96], sizes = [2, 32], strides = [1, 1]} : vector<2x128xf32> to vector<2x32xf32>
    %246 = math.tanh %244 : vector<2x32xf32>
    %247 = arith.mulf %245, %246 : vector<2x32xf32>
    %248 = tpu.concatenate %229, %229, %247 in 1 : vector<2x32xf32>, vector<2x32xf32>, vector<2x32xf32> -> vector<2x96xf32>
    %249 = arith.truncf %248 : vector<2x96xf32> to vector<2x96xbf16>
    %cst_49 = arith.constant dense<0.000000e+00> : vector<2x256xf32>
    %250 = tpu.matmul %249, %4, %cst_49 {dimension_numbers = #tpu.dot_dimension_numbers<[1], [0], [0], [1], [0, 0, 1, 1], [], []>} : vector<2x96xbf16>, vector<96x256xbf16>, vector<2x256xf32> -> vector<2x256xf32>
    %251 = vector.extract_strided_slice %66 {offsets = [10, 0], sizes = [2, 128], strides = [1, 1]} : vector<16x128xf32> to vector<2x128xf32>
    %252 = vector.extract_strided_slice %250 {offsets = [0, 0], sizes = [2, 128], strides = [1, 1]} : vector<2x256xf32> to vector<2x128xf32>
    %253 = arith.addf %251, %252 : vector<2x128xf32>
    %254 = arith.negf %253 : vector<2x128xf32>
    %255 = math.exp %254 : vector<2x128xf32>
    %cst_50 = arith.constant 1.000000e+00 : f32
    %256 = vector.broadcast %cst_50 : f32 to vector<2x128xf32>
    %257 = arith.addf %256, %255 : vector<2x128xf32>
    %258 = arith.divf %256, %257 : vector<2x128xf32>
    %259 = vector.extract_strided_slice %258 {offsets = [0, 32], sizes = [2, 32], strides = [1, 1]} : vector<2x128xf32> to vector<2x32xf32>
    %260 = arith.mulf %259, %226 : vector<2x32xf32>
    %261 = vector.extract_strided_slice %258 {offsets = [0, 0], sizes = [2, 32], strides = [1, 1]} : vector<2x128xf32> to vector<2x32xf32>
    %262 = vector.extract_strided_slice %253 {offsets = [0, 64], sizes = [2, 32], strides = [1, 1]} : vector<2x128xf32> to vector<2x32xf32>
    %263 = math.tanh %262 : vector<2x32xf32>
    %264 = arith.mulf %261, %263 : vector<2x32xf32>
    %265 = arith.addf %260, %264 : vector<2x32xf32>
    %266 = vector.extract_strided_slice %258 {offsets = [0, 96], sizes = [2, 32], strides = [1, 1]} : vector<2x128xf32> to vector<2x32xf32>
    %267 = math.tanh %265 : vector<2x32xf32>
    %268 = arith.mulf %266, %267 : vector<2x32xf32>
    %269 = vector.extract_strided_slice %250 {offsets = [0, 128], sizes = [2, 128], strides = [1, 1]} : vector<2x256xf32> to vector<2x128xf32>
    %270 = vector.broadcast %6 : vector<1x128xf32> to vector<2x128xf32>
    %271 = arith.addf %269, %270 : vector<2x128xf32>
    %272 = arith.negf %271 : vector<2x128xf32>
    %273 = math.exp %272 : vector<2x128xf32>
    %cst_51 = arith.constant 1.000000e+00 : f32
    %274 = vector.broadcast %cst_51 : f32 to vector<2x128xf32>
    %275 = arith.addf %274, %273 : vector<2x128xf32>
    %276 = arith.divf %274, %275 : vector<2x128xf32>
    %277 = vector.extract_strided_slice %276 {offsets = [0, 32], sizes = [2, 32], strides = [1, 1]} : vector<2x128xf32> to vector<2x32xf32>
    %278 = arith.mulf %277, %244 : vector<2x32xf32>
    %279 = vector.extract_strided_slice %276 {offsets = [0, 0], sizes = [2, 32], strides = [1, 1]} : vector<2x128xf32> to vector<2x32xf32>
    %280 = vector.extract_strided_slice %271 {offsets = [0, 64], sizes = [2, 32], strides = [1, 1]} : vector<2x128xf32> to vector<2x32xf32>
    %281 = math.tanh %280 : vector<2x32xf32>
    %282 = arith.mulf %279, %281 : vector<2x32xf32>
    %283 = arith.addf %278, %282 : vector<2x32xf32>
    %284 = vector.extract_strided_slice %276 {offsets = [0, 96], sizes = [2, 32], strides = [1, 1]} : vector<2x128xf32> to vector<2x32xf32>
    %285 = math.tanh %283 : vector<2x32xf32>
    %286 = arith.mulf %284, %285 : vector<2x32xf32>
    %287 = tpu.concatenate %268, %268, %286 in 1 : vector<2x32xf32>, vector<2x32xf32>, vector<2x32xf32> -> vector<2x96xf32>
    %288 = arith.truncf %287 : vector<2x96xf32> to vector<2x96xbf16>
    %cst_52 = arith.constant dense<0.000000e+00> : vector<2x256xf32>
    %289 = tpu.matmul %288, %4, %cst_52 {dimension_numbers = #tpu.dot_dimension_numbers<[1], [0], [0], [1], [0, 0, 1, 1], [], []>} : vector<2x96xbf16>, vector<96x256xbf16>, vector<2x256xf32> -> vector<2x256xf32>
    %290 = vector.extract_strided_slice %66 {offsets = [12, 0], sizes = [2, 128], strides = [1, 1]} : vector<16x128xf32> to vector<2x128xf32>
    %291 = vector.extract_strided_slice %289 {offsets = [0, 0], sizes = [2, 128], strides = [1, 1]} : vector<2x256xf32> to vector<2x128xf32>
    %292 = arith.addf %290, %291 : vector<2x128xf32>
    %293 = arith.negf %292 : vector<2x128xf32>
    %294 = math.exp %293 : vector<2x128xf32>
    %cst_53 = arith.constant 1.000000e+00 : f32
    %295 = vector.broadcast %cst_53 : f32 to vector<2x128xf32>
    %296 = arith.addf %295, %294 : vector<2x128xf32>
    %297 = arith.divf %295, %296 : vector<2x128xf32>
    %298 = vector.extract_strided_slice %297 {offsets = [0, 32], sizes = [2, 32], strides = [1, 1]} : vector<2x128xf32> to vector<2x32xf32>
    %299 = arith.mulf %298, %265 : vector<2x32xf32>
    %300 = vector.extract_strided_slice %297 {offsets = [0, 0], sizes = [2, 32], strides = [1, 1]} : vector<2x128xf32> to vector<2x32xf32>
    %301 = vector.extract_strided_slice %292 {offsets = [0, 64], sizes = [2, 32], strides = [1, 1]} : vector<2x128xf32> to vector<2x32xf32>
    %302 = math.tanh %301 : vector<2x32xf32>
    %303 = arith.mulf %300, %302 : vector<2x32xf32>
    %304 = arith.addf %299, %303 : vector<2x32xf32>
    %305 = vector.extract_strided_slice %297 {offsets = [0, 96], sizes = [2, 32], strides = [1, 1]} : vector<2x128xf32> to vector<2x32xf32>
    %306 = math.tanh %304 : vector<2x32xf32>
    %307 = arith.mulf %305, %306 : vector<2x32xf32>
    %308 = vector.extract_strided_slice %289 {offsets = [0, 128], sizes = [2, 128], strides = [1, 1]} : vector<2x256xf32> to vector<2x128xf32>
    %309 = vector.broadcast %6 : vector<1x128xf32> to vector<2x128xf32>
    %310 = arith.addf %308, %309 : vector<2x128xf32>
    %311 = arith.negf %310 : vector<2x128xf32>
    %312 = math.exp %311 : vector<2x128xf32>
    %cst_54 = arith.constant 1.000000e+00 : f32
    %313 = vector.broadcast %cst_54 : f32 to vector<2x128xf32>
    %314 = arith.addf %313, %312 : vector<2x128xf32>
    %315 = arith.divf %313, %314 : vector<2x128xf32>
    %316 = vector.extract_strided_slice %315 {offsets = [0, 32], sizes = [2, 32], strides = [1, 1]} : vector<2x128xf32> to vector<2x32xf32>
    %317 = arith.mulf %316, %283 : vector<2x32xf32>
    %318 = vector.extract_strided_slice %315 {offsets = [0, 0], sizes = [2, 32], strides = [1, 1]} : vector<2x128xf32> to vector<2x32xf32>
    %319 = vector.extract_strided_slice %310 {offsets = [0, 64], sizes = [2, 32], strides = [1, 1]} : vector<2x128xf32> to vector<2x32xf32>
    %320 = math.tanh %319 : vector<2x32xf32>
    %321 = arith.mulf %318, %320 : vector<2x32xf32>
    %322 = arith.addf %317, %321 : vector<2x32xf32>
    %323 = vector.extract_strided_slice %315 {offsets = [0, 96], sizes = [2, 32], strides = [1, 1]} : vector<2x128xf32> to vector<2x32xf32>
    %324 = math.tanh %322 : vector<2x32xf32>
    %325 = arith.mulf %323, %324 : vector<2x32xf32>
    %326 = tpu.concatenate %307, %307, %325 in 1 : vector<2x32xf32>, vector<2x32xf32>, vector<2x32xf32> -> vector<2x96xf32>
    %327 = arith.truncf %326 : vector<2x96xf32> to vector<2x96xbf16>
    %cst_55 = arith.constant dense<0.000000e+00> : vector<2x256xf32>
    %328 = tpu.matmul %327, %4, %cst_55 {dimension_numbers = #tpu.dot_dimension_numbers<[1], [0], [0], [1], [0, 0, 1, 1], [], []>} : vector<2x96xbf16>, vector<96x256xbf16>, vector<2x256xf32> -> vector<2x256xf32>
    %329 = vector.extract_strided_slice %66 {offsets = [14, 0], sizes = [2, 128], strides = [1, 1]} : vector<16x128xf32> to vector<2x128xf32>
    %330 = vector.extract_strided_slice %328 {offsets = [0, 0], sizes = [2, 128], strides = [1, 1]} : vector<2x256xf32> to vector<2x128xf32>
    %331 = arith.addf %329, %330 : vector<2x128xf32>
    %332 = arith.negf %331 : vector<2x128xf32>
    %333 = math.exp %332 : vector<2x128xf32>
    %cst_56 = arith.constant 1.000000e+00 : f32
    %334 = vector.broadcast %cst_56 : f32 to vector<2x128xf32>
    %335 = arith.addf %334, %333 : vector<2x128xf32>
    %336 = arith.divf %334, %335 : vector<2x128xf32>
    %337 = vector.extract_strided_slice %336 {offsets = [0, 32], sizes = [2, 32], strides = [1, 1]} : vector<2x128xf32> to vector<2x32xf32>
    %338 = arith.mulf %337, %304 : vector<2x32xf32>
    %339 = vector.extract_strided_slice %336 {offsets = [0, 0], sizes = [2, 32], strides = [1, 1]} : vector<2x128xf32> to vector<2x32xf32>
    %340 = vector.extract_strided_slice %331 {offsets = [0, 64], sizes = [2, 32], strides = [1, 1]} : vector<2x128xf32> to vector<2x32xf32>
    %341 = math.tanh %340 : vector<2x32xf32>
    %342 = arith.mulf %339, %341 : vector<2x32xf32>
    %343 = arith.addf %338, %342 : vector<2x32xf32>
    %344 = vector.extract_strided_slice %336 {offsets = [0, 96], sizes = [2, 32], strides = [1, 1]} : vector<2x128xf32> to vector<2x32xf32>
    %345 = math.tanh %343 : vector<2x32xf32>
    %346 = arith.mulf %344, %345 : vector<2x32xf32>
    %347 = vector.extract_strided_slice %328 {offsets = [0, 128], sizes = [2, 128], strides = [1, 1]} : vector<2x256xf32> to vector<2x128xf32>
    %348 = vector.broadcast %6 : vector<1x128xf32> to vector<2x128xf32>
    %349 = arith.addf %347, %348 : vector<2x128xf32>
    %350 = arith.negf %349 : vector<2x128xf32>
    %351 = math.exp %350 : vector<2x128xf32>
    %cst_57 = arith.constant 1.000000e+00 : f32
    %352 = vector.broadcast %cst_57 : f32 to vector<2x128xf32>
    %353 = arith.addf %352, %351 : vector<2x128xf32>
    %354 = arith.divf %352, %353 : vector<2x128xf32>
    %355 = vector.extract_strided_slice %354 {offsets = [0, 32], sizes = [2, 32], strides = [1, 1]} : vector<2x128xf32> to vector<2x32xf32>
    %356 = arith.mulf %355, %322 : vector<2x32xf32>
    %357 = vector.extract_strided_slice %354 {offsets = [0, 0], sizes = [2, 32], strides = [1, 1]} : vector<2x128xf32> to vector<2x32xf32>
    %358 = vector.extract_strided_slice %349 {offsets = [0, 64], sizes = [2, 32], strides = [1, 1]} : vector<2x128xf32> to vector<2x32xf32>
    %359 = math.tanh %358 : vector<2x32xf32>
    %360 = arith.mulf %357, %359 : vector<2x32xf32>
    %361 = arith.addf %356, %360 : vector<2x32xf32>
    %362 = vector.extract_strided_slice %354 {offsets = [0, 96], sizes = [2, 32], strides = [1, 1]} : vector<2x128xf32> to vector<2x32xf32>
    %363 = math.tanh %361 : vector<2x32xf32>
    %364 = arith.mulf %362, %363 : vector<2x32xf32>
    %365 = tpu.concatenate %346, %346, %364 in 1 : vector<2x32xf32>, vector<2x32xf32>, vector<2x32xf32> -> vector<2x96xf32>
    %366 = arith.truncf %365 : vector<2x96xf32> to vector<2x96xbf16>
    %cst_58 = arith.constant dense<0.000000e+00> : vector<2x256xf32>
    %367 = tpu.matmul %366, %4, %cst_58 {dimension_numbers = #tpu.dot_dimension_numbers<[1], [0], [0], [1], [0, 0, 1, 1], [], []>} : vector<2x96xbf16>, vector<96x256xbf16>, vector<2x256xf32> -> vector<2x256xf32>
    %368 = vector.extract_strided_slice %367 {offsets = [0, 128], sizes = [2, 128], strides = [1, 1]} : vector<2x256xf32> to vector<2x128xf32>
    %369 = vector.broadcast %6 : vector<1x128xf32> to vector<2x128xf32>
    %370 = arith.addf %368, %369 : vector<2x128xf32>
    %371 = arith.negf %370 : vector<2x128xf32>
    %372 = math.exp %371 : vector<2x128xf32>
    %cst_59 = arith.constant 1.000000e+00 : f32
    %373 = vector.broadcast %cst_59 : f32 to vector<2x128xf32>
    %374 = arith.addf %373, %372 : vector<2x128xf32>
    %375 = arith.divf %373, %374 : vector<2x128xf32>
    %376 = vector.extract_strided_slice %375 {offsets = [0, 32], sizes = [2, 32], strides = [1, 1]} : vector<2x128xf32> to vector<2x32xf32>
    %377 = arith.mulf %376, %361 : vector<2x32xf32>
    %378 = vector.extract_strided_slice %375 {offsets = [0, 0], sizes = [2, 32], strides = [1, 1]} : vector<2x128xf32> to vector<2x32xf32>
    %379 = vector.extract_strided_slice %370 {offsets = [0, 64], sizes = [2, 32], strides = [1, 1]} : vector<2x128xf32> to vector<2x32xf32>
    %380 = math.tanh %379 : vector<2x32xf32>
    %381 = arith.mulf %378, %380 : vector<2x32xf32>
    %382 = arith.addf %377, %381 : vector<2x32xf32>
    %383 = vector.extract_strided_slice %375 {offsets = [0, 96], sizes = [2, 32], strides = [1, 1]} : vector<2x128xf32> to vector<2x32xf32>
    %384 = math.tanh %382 : vector<2x32xf32>
    %385 = arith.mulf %383, %384 : vector<2x32xf32>
    %386 = vector.extract_strided_slice %130 {offsets = [0, 0], sizes = [1, 32], strides = [1, 1]} : vector<2x32xf32> to vector<1x32xf32>
    %387 = vector.extract_strided_slice %169 {offsets = [0, 0], sizes = [1, 32], strides = [1, 1]} : vector<2x32xf32> to vector<1x32xf32>
    %388 = vector.extract_strided_slice %208 {offsets = [0, 0], sizes = [1, 32], strides = [1, 1]} : vector<2x32xf32> to vector<1x32xf32>
    %389 = vector.extract_strided_slice %247 {offsets = [0, 0], sizes = [1, 32], strides = [1, 1]} : vector<2x32xf32> to vector<1x32xf32>
    %390 = vector.extract_strided_slice %286 {offsets = [0, 0], sizes = [1, 32], strides = [1, 1]} : vector<2x32xf32> to vector<1x32xf32>
    %391 = vector.extract_strided_slice %325 {offsets = [0, 0], sizes = [1, 32], strides = [1, 1]} : vector<2x32xf32> to vector<1x32xf32>
    %392 = vector.extract_strided_slice %364 {offsets = [0, 0], sizes = [1, 32], strides = [1, 1]} : vector<2x32xf32> to vector<1x32xf32>
    %393 = vector.extract_strided_slice %385 {offsets = [0, 0], sizes = [1, 32], strides = [1, 1]} : vector<2x32xf32> to vector<1x32xf32>
    %394 = vector.extract_strided_slice %130 {offsets = [1, 0], sizes = [1, 32], strides = [1, 1]} : vector<2x32xf32> to vector<1x32xf32>
    %395 = vector.extract_strided_slice %169 {offsets = [1, 0], sizes = [1, 32], strides = [1, 1]} : vector<2x32xf32> to vector<1x32xf32>
    %396 = vector.extract_strided_slice %208 {offsets = [1, 0], sizes = [1, 32], strides = [1, 1]} : vector<2x32xf32> to vector<1x32xf32>
    %397 = vector.extract_strided_slice %247 {offsets = [1, 0], sizes = [1, 32], strides = [1, 1]} : vector<2x32xf32> to vector<1x32xf32>
    %398 = vector.extract_strided_slice %286 {offsets = [1, 0], sizes = [1, 32], strides = [1, 1]} : vector<2x32xf32> to vector<1x32xf32>
    %399 = vector.extract_strided_slice %325 {offsets = [1, 0], sizes = [1, 32], strides = [1, 1]} : vector<2x32xf32> to vector<1x32xf32>
    %400 = vector.extract_strided_slice %364 {offsets = [1, 0], sizes = [1, 32], strides = [1, 1]} : vector<2x32xf32> to vector<1x32xf32>
    %401 = vector.extract_strided_slice %385 {offsets = [1, 0], sizes = [1, 32], strides = [1, 1]} : vector<2x32xf32> to vector<1x32xf32>
    %402 = tpu.concatenate %386, %387, %388, %389, %390, %391, %392, %393, %394, %395, %396, %397, %398, %399, %400, %401 in 0 : vector<1x32xf32>, vector<1x32xf32>, vector<1x32xf32>, vector<1x32xf32>, vector<1x32xf32>, vector<1x32xf32>, vector<1x32xf32>, vector<1x32xf32>, vector<1x32xf32>, vector<1x32xf32>, vector<1x32xf32>, vector<1x32xf32>, vector<1x32xf32>, vector<1x32xf32>, vector<1x32xf32>, vector<1x32xf32> -> vector<16x32xf32>
    %cst_60 = arith.constant dense<0.000000e+00> : vector<16xf32>
    %403 = vector.multi_reduction <add>, %402, %cst_60 [1] : vector<16x32xf32> to vector<16xf32>
    %404 = vector.shape_cast %403 : vector<16xf32> to vector<16x1xf32>
    %cst_61 = arith.constant 3.200000e+01 : f32
    %405 = vector.broadcast %cst_61 : f32 to vector<16x1xf32>
    %406 = arith.divf %404, %405 : vector<16x1xf32>
    %407 = vector.broadcast %406 : vector<16x1xf32> to vector<16x32xf32>
    %408 = arith.subf %402, %407 : vector<16x32xf32>
    %409 = arith.mulf %408, %408 : vector<16x32xf32>
    %cst_62 = arith.constant dense<0.000000e+00> : vector<16xf32>
    %410 = vector.multi_reduction <add>, %409, %cst_62 [1] : vector<16x32xf32> to vector<16xf32>
    %411 = vector.shape_cast %410 : vector<16xf32> to vector<16x1xf32>
    %cst_63 = arith.constant 3.200000e+01 : f32
    %412 = vector.broadcast %cst_63 : f32 to vector<16x1xf32>
    %413 = arith.divf %411, %412 : vector<16x1xf32>
    %414 = vector.broadcast %406 : vector<16x1xf32> to vector<16x32xf32>
    %415 = arith.subf %402, %414 : vector<16x32xf32>
    %cst_64 = arith.constant 9.99999974E-6 : f32
    %416 = vector.broadcast %cst_64 : f32 to vector<16x1xf32>
    %417 = arith.addf %413, %416 : vector<16x1xf32>
    %418 = math.rsqrt %417 : vector<16x1xf32>
    %419 = vector.broadcast %418 : vector<16x1xf32> to vector<16x32xf32>
    %420 = arith.mulf %415, %419 : vector<16x32xf32>
    %421 = vector.broadcast %11 : vector<1x32xf32> to vector<16x32xf32>
    %422 = arith.mulf %420, %421 : vector<16x32xf32>
    %423 = vector.broadcast %12 : vector<1x32xf32> to vector<16x32xf32>
    %424 = arith.addf %422, %423 : vector<16x32xf32>
    %425 = arith.truncf %424 : vector<16x32xf32> to vector<16x32xbf16>
    %cst_65 = arith.constant dense<0.000000e+00> : vector<16x32xf32>
    %426 = tpu.matmul %425, %1, %cst_65 {dimension_numbers = #tpu.dot_dimension_numbers<[1], [0], [0], [1], [0, 0, 1, 1], [], []>} : vector<16x32xbf16>, vector<32x32xbf16>, vector<16x32xf32> -> vector<16x32xf32>
    %427 = vector.broadcast %13 : vector<1x32xf32> to vector<16x32xf32>
    %428 = arith.addf %426, %427 : vector<16x32xf32>
    %cst_66 = arith.constant 5.000000e-01 : f32
    %429 = vector.broadcast %cst_66 : f32 to vector<16x32xf32>
    %430 = arith.mulf %429, %428 : vector<16x32xf32>
    %cst_67 = arith.constant 2.000000e+00 : f32
    %431 = math.sqrt %cst_67 : f32
    %432 = vector.broadcast %431 : f32 to vector<16x32xf32>
    %433 = arith.divf %428, %432 : vector<16x32xf32>
    %434 = math.erf %433 : vector<16x32xf32>
    %cst_68 = arith.constant 1.000000e+00 : f32
    %435 = vector.broadcast %cst_68 : f32 to vector<16x32xf32>
    %436 = arith.addf %435, %434 : vector<16x32xf32>
    %437 = arith.mulf %430, %436 : vector<16x32xf32>
    %438 = arith.truncf %437 : vector<16x32xf32> to vector<16x32xbf16>
    %cst_69 = arith.constant dense<0.000000e+00> : vector<16x128xf32>
    %439 = tpu.matmul %438, %3, %cst_69 {dimension_numbers = #tpu.dot_dimension_numbers<[1], [0], [0], [1], [0, 0, 1, 1], [], []>} : vector<16x32xbf16>, vector<32x128xbf16>, vector<16x128xf32> -> vector<16x128xf32>
    %440 = vector.broadcast %7 : vector<1x128xf32> to vector<16x128xf32>
    %441 = arith.addf %439, %440 : vector<16x128xf32>
    %c0_70 = arith.constant 0 : index
    %c0_71 = arith.constant 0 : index
    %442 = vector.load %arg5[%c0_70, %c0_71] : memref<16x128xf32, #tpu.memory_space<vmem>>, vector<16x128xf32>
    tpu.vector_store %arg5[%c0_70, %c0_71], %441 {strides = array<i32>} : memref<16x128xf32, #tpu.memory_space<vmem>>, vector<16x128xf32>,
    return
  }
}

</mosaic_0001>

<llo_original>
// kernel: pallas_forward.1
$region0: #{pallas_forward.1}
  #allocation0 [shape = 'u32[]', space=smem, size = 0x4, offset = 0x4, fixed_abs, tag = 'smem constant byte address 0x4 - core index']
  #allocation1 [shape = 'u32[144,128]{1,0:T(1,128)}', space=vmem, size = 0x12000, scoped, tag = 'internal scratch']
  %s0 = inlined_call_operand.vmem [shape: s32[16,1], index: 0, kind: input, shape index: {}]
  %s1 = inlined_call_operand.vmem [shape: s32[2,1], index: 1, kind: input, shape index: {}]
  %s2 = inlined_call_operand.vmem [shape: bf16[288,32], index: 2, kind: input, shape index: {}]
  %s3 = inlined_call_operand.vmem [shape: bf16[160,256], index: 3, kind: input, shape index: {}]
  %s4 = inlined_call_operand.vmem [shape: f32[9,128], index: 4, kind: input, shape index: {}]
  %s5 = inlined_call_operand.hbm [shape: f32[16,128], index: 5, kind: output, shape index: {}]
  %s6 = sld [smem:[#allocation0]]
  $region30: #{pallas_forward.1} parent=0
    _
  %s8 = ssub.s32 1, %s6
  %s9 = scalar_select 0, %s8, %s6
  $region1: #{pallas_forward.1} parent=0
    #allocation2 [shape = 'u8[8192]{0}', space=vmem, size = 0x2000, scoped, tag = 'output window, operand 0, single buffered']
    #allocation3 [shape = 's32[1]{0}', space=sflag, size = 0x4, scoped, tag = 'scoped memory for pallas_forward.1']
    %10 = vsyncpa [#allocation3], 0
    // Predicated region
    $region2: #{pallas_forward.1} parent=1 // pred_check
      _
    $region3: #{pallas_forward.1} parent=1 // pred_check_branch
      %12 = sbr.rel (0) target = $region5
    $region4: #{pallas_forward.1} parent=1 // pred_region
      _
    $region5: #{pallas_forward.1} parent=1 // pred_fallthru
      _
    // Predicated region
    $region6: #{pallas_forward.1} parent=1 // pred_check
      _
    $region7: #{pallas_forward.1} parent=1 // pred_check_branch
      %14 = sbr.rel (0) target = $region9
    $region8: #{pallas_forward.1} parent=1 // pred_region
      _
    $region9: #{pallas_forward.1} parent=1 // pred_fallthru
      _
    // Predicated region
    $region10: #{pallas_forward.1} parent=1 // pred_check
      _
    $region11: #{pallas_forward.1} parent=1 // pred_check_branch
      %16 = sbr.rel (0) target = $region13
    $region12: #{pallas_forward.1} parent=1 // pred_region
      _
    $region13: #{pallas_forward.1} parent=1 // pred_fallthru
      _
    // Predicated region
    $region14: #{pallas_forward.1} parent=1 // pred_check
      _
    $region15: #{pallas_forward.1} parent=1 // pred_check_branch
      %18 = sbr.rel (0) target = $region17
    $region16: #{pallas_forward.1} parent=1 // pred_region
      _
    $region17: #{pallas_forward.1} parent=1 // pred_fallthru
      _
    // Predicated region
    $region18: #{pallas_forward.1} parent=1 // pred_check
      _
    $region19: #{pallas_forward.1} parent=1 // pred_check_branch
      %20 = sbr.rel (0) target = $region21
    $region20: #{pallas_forward.1} parent=1 // pred_region
      _
    $region21: #{pallas_forward.1} parent=1 // pred_fallthru
      _
    %v22 = vld [vmem:[%s2] sm:$0xf]
    %v23 = vld [vmem:[%s2 + $0x4] sm:$0xf]
    %v24 = vld [vmem:[%s2 + $0x8] sm:$0xf]
    %v25 = vld [vmem:[%s2 + $0xc] sm:$0xf]
    %v26 = vld [vmem:[%s2 + $0x10] sm:$0xf]
    %v27 = vld [vmem:[%s2 + $0x14] sm:$0xf]
    %v28 = vld [vmem:[%s2 + $0x18] sm:$0xf]
    %v29 = vld [vmem:[%s2 + $0x1c] sm:$0xf]
    %v30 = vld [vmem:[%s2 + $0x20] sm:$0xf]
    %v31 = vld [vmem:[%s2 + $0x24] sm:$0xf]
    %v32 = vld [vmem:[%s2 + $0x28] sm:$0xf]
    %v33 = vld [vmem:[%s2 + $0x2c] sm:$0xf]
    %v34 = vld [vmem:[%s2 + $0x30] sm:$0xf]
    %v35 = vld [vmem:[%s2 + $0x34] sm:$0xf]
    %v36 = vld [vmem:[%s2 + $0x38] sm:$0xf]
    %v37 = vld [vmem:[%s2 + $0x3c] sm:$0xf]
    %v38 = vld [vmem:[%s2 + $0x40] sm:$0xf]
    %v39 = vld [vmem:[%s2 + $0x44] sm:$0xf]
    %v40 = vld [vmem:[%s2 + $0x48] sm:$0xf]
    %v41 = vld [vmem:[%s2 + $0x4c] sm:$0xf]
    %v42 = vld [vmem:[%s2 + $0x50] sm:$0xf]
    %v43 = vld [vmem:[%s2 + $0x54] sm:$0xf]
    %v44 = vld [vmem:[%s2 + $0x58] sm:$0xf]
    %v45 = vld [vmem:[%s2 + $0x5c] sm:$0xf]
    %v46 = vld [vmem:[%s2 + $0x60] sm:$0xf]
    %v47 = vld [vmem:[%s2 + $0x64] sm:$0xf]
    %v48 = vld [vmem:[%s2 + $0x68] sm:$0xf]
    %v49 = vld [vmem:[%s2 + $0x6c] sm:$0xf]
    %v50 = vld [vmem:[%s2 + $0x70] sm:$0xf]
    %v51 = vld [vmem:[%s2 + $0x74] sm:$0xf]
    %v52 = vld [vmem:[%s2 + $0x78] sm:$0xf]
    %v53 = vld [vmem:[%s2 + $0x7c] sm:$0xf]
    %v54 = vld [vmem:[%s2 + $0x80] sm:$0xf]
    %v55 = vld [vmem:[%s2 + $0x84] sm:$0xf]
    %v56 = vld [vmem:[%s2 + $0x88] sm:$0xf]
    %v57 = vld [vmem:[%s2 + $0x8c] sm:$0xf]
    %v58 = vld [vmem:[%s3] sm:$0xf]
    %v59 = vld [vmem:[%s3 + $0x8] sm:$0xf]
    %v60 = vld [vmem:[%s3 + $0x10] sm:$0xf]
    %v61 = vld [vmem:[%s3 + $0x18] sm:$0xf]
    %v62 = vld [vmem:[%s3 + $0x20] sm:$0xf]
    %v63 = vld [vmem:[%s3 + $0x28] sm:$0xf]
    %v64 = vld [vmem:[%s3 + $0x30] sm:$0xf]
    %v65 = vld [vmem:[%s3 + $0x38] sm:$0xf]
    %v66 = vld [vmem:[%s3 + $0x40] sm:$0xff]
    %v67 = vld [vmem:[%s3 + $0x48] sm:$0xff]
    %v68 = vld [vmem:[%s3 + $0x50] sm:$0xff]
    %v69 = vld [vmem:[%s3 + $0x58] sm:$0xff]
    %v70 = vld [vmem:[%s3 + $0x60] sm:$0xff]
    %v71 = vld [vmem:[%s3 + $0x68] sm:$0xff]
    %v72 = vld [vmem:[%s3 + $0x70] sm:$0xff]
    %v73 = vld [vmem:[%s3 + $0x78] sm:$0xff]
    %v74 = vld [vmem:[%s3 + $0x80] sm:$0xff]
    %v75 = vld [vmem:[%s3 + $0x88] sm:$0xff]
    %v76 = vld [vmem:[%s3 + $0x90] sm:$0xff]
    %v77 = vld [vmem:[%s3 + $0x98] sm:$0xff]
    %v78 = vld [vmem:[%s4] sm:$0x1]
    %v79 = vld [vmem:[%s4 + $0x1] sm:$0x1]
    %v80 = vld [vmem:[%s4 + $0x2] sm:$0x1]
    %v81 = vld [vmem:[%s4 + $0x3] sm:$0x1]
    %v82 = vld [vmem:[%s4 + $0x4] sm:$0x1]
    %v83 = vld [vmem:[%s4 + $0x5] sm:$0x1]
    %v84 = vld [vmem:[%s4 + $0x6] sm:$0x1]
    %v85 = vld [vmem:[%s4 + $0x7] sm:$0x1]
    %v86 = vld [vmem:[%s4 + $0x8] sm:$0x1]
    %v87 = vld [vmem:[%s0] sm:$0xff]
    %v88 = vld [vmem:[%s0 + $0x8] sm:$0xff]
    %v89 = vld [vmem:[%s1] sm:$0x3]
    %v90 = vrot.slane %v89, 6
    %v91 = vrot.slane %v89, 4
    %v92 = vrot.slane %v89, 2
    %vm93 = vcmask 1041408
    %v94 = vsel %vm93, %v89, %v90
    %vm95 = vcmask 1043456
    %v96 = vsel %vm95, %v94, %v91
    %vm97 = vcmask 1045504
    %v98 = vsel %vm97, %v96, %v92
    %v99 = vlaneseq
    %v100 = vand.u32 %v99, 127
    %v101 = vadd.s32 %v100, 128
    %102 = vset.pattern.permute.xlu0 0
    %103 = vperm.xlu0 %102, %v87
    %v104 = vpop.permute.xlu0 %103
    %105 = vset.pattern.permute.xlu0 0
    %106 = vperm.xlu0 %105, %v88
    %v107 = vpop.permute.xlu0 %106
    %vm108 = vcmp.eq.s32.totalorder %v100, %v104
    %vm109 = vcmp.eq.s32.totalorder %v101, %v104
    %vm110 = vcmp.eq.s32.totalorder %v100, %v107
    %vm111 = vcmp.eq.s32.totalorder %v101, %v107
    %v112 = vadd.s32 %v98, 128
    %113 = vset.pattern.permute.xlu0 0
    %114 = vperm.xlu0 %113, %v112
    %v115 = vpop.permute.xlu0 %114
    %vm116 = vcmp.eq.s32.totalorder %v100, %v115
    %vm117 = vcmp.eq.s32.totalorder %v101, %v115
    %vm118 = vmor %vm108, %vm116
    %vm119 = vmor %vm109, %vm117
    %vm120 = vmor %vm110, %vm116
    %vm121 = vmor %vm111, %vm117
    %v122 = vsel %vm118, 1.0, 0.0
    %v123 = vsel %vm119, 1.0, 0.0
    %v124 = vsel %vm120, 1.0, 0.0
    %v125 = vsel %vm121, 1.0, 0.0
    %v126 = vpack.c.bf16 %v124, %v122
    %v127 = vpack.c.bf16 %v125, %v123
    %v128 = vlaneseq
    %v129 = vshrl.u32 %v128, 7
    %v130 = vsub.s32 0, %v129
    %v131 = vrot.slane %v81, %v130
    %v164 = vunpack.c.l.b16 %v22
    %v165 = vunpack.c.l.b16 %v23
    %v166 = vunpack.c.l.b16 %v24
    %v167 = vunpack.c.l.b16 %v25
    %v168 = vunpack.c.l.b16 %v26
    %v169 = vunpack.c.l.b16 %v27
    %v170 = vunpack.c.l.b16 %v28
    %v171 = vunpack.c.l.b16 %v29
    %v172 = vunpack.c.l.b16 %v30
    %v173 = vunpack.c.l.b16 %v31
    %v174 = vunpack.c.l.b16 %v32
    %v175 = vunpack.c.l.b16 %v33
    %v176 = vunpack.c.l.b16 %v34
    %v177 = vunpack.c.l.b16 %v35
    %v178 = vunpack.c.l.b16 %v36
    %v179 = vunpack.c.l.b16 %v37
    %v180 = vunpack.c.l.b16 %v38
    %v181 = vunpack.c.l.b16 %v39
    %v182 = vunpack.c.l.b16 %v40
    %v183 = vunpack.c.l.b16 %v41
    %v184 = vunpack.c.l.b16 %v42
    %v185 = vunpack.c.l.b16 %v43
    %v186 = vunpack.c.l.b16 %v44
    %v187 = vunpack.c.l.b16 %v45
    %v188 = vunpack.c.l.b16 %v46
    %v189 = vunpack.c.l.b16 %v47
    %v190 = vunpack.c.l.b16 %v48
    %v191 = vunpack.c.l.b16 %v49
    %v192 = vunpack.c.l.b16 %v50
    %v193 = vunpack.c.l.b16 %v51
    %v194 = vunpack.c.l.b16 %v52
    %v195 = vunpack.c.l.b16 %v53
    %v196 = vpack.c.b16 %v165, %v164
    %v197 = vpack.c.b16 %v167, %v166
    %v198 = vpack.c.b16 %v169, %v168
    %v199 = vpack.c.b16 %v171, %v170
    %v200 = vpack.c.b16 %v173, %v172
    %v201 = vpack.c.b16 %v175, %v174
    %v202 = vpack.c.b16 %v177, %v176
    %v203 = vpack.c.b16 %v179, %v178
    %v204 = vpack.c.b16 %v181, %v180
    %v205 = vpack.c.b16 %v183, %v182
    %v206 = vpack.c.b16 %v185, %v184
    %v207 = vpack.c.b16 %v187, %v186
    %v208 = vpack.c.b16 %v189, %v188
    %v209 = vpack.c.b16 %v191, %v190
    %v210 = vpack.c.b16 %v193, %v192
    %v211 = vpack.c.b16 %v195, %v194
    %228 = vmatprep.subr.bf16.mxu0 0
    %229 = vmatpush1.bf16.msra.mxu0 %v196
    %230 = vmatprep.subr.bf16.mxu0 0
    %231 = vmatpush1.bf16.msra.mxu0 %v197
    %232 = vmatprep.subr.bf16.mxu0 0
    %233 = vmatpush1.bf16.msra.mxu0 %v198
    %234 = vmatprep.subr.bf16.mxu0 0
    %235 = vmatpush1.bf16.msra.mxu0 %v199
    %236 = vmatprep.subr.bf16.mxu0 0
    %237 = vmatpush1.bf16.msra.mxu0 %v200
    %238 = vmatprep.subr.bf16.mxu0 0
    %239 = vmatpush1.bf16.msra.mxu0 %v201
    %240 = vmatprep.subr.bf16.mxu0 0
    %241 = vmatpush1.bf16.msra.mxu0 %v202
    %242 = vmatprep.subr.bf16.mxu0 0
    %243 = vmatpush1.bf16.msra.mxu0 %v203
    %244 = vmatprep.subr.bf16.mxu0 0
    %245 = vmatpush1.bf16.msra.mxu0 %v204
    %246 = vmatprep.subr.bf16.mxu0 0
    %247 = vmatpush1.bf16.msra.mxu0 %v205
    %248 = vmatprep.subr.bf16.mxu0 0
    %249 = vmatpush1.bf16.msra.mxu0 %v206
    %250 = vmatprep.subr.bf16.mxu0 0
    %251 = vmatpush1.bf16.msra.mxu0 %v207
    %252 = vmatprep.subr.bf16.mxu0 0
    %253 = vmatpush1.bf16.msra.mxu0 %v208
    %254 = vmatprep.subr.bf16.mxu0 0
    %255 = vmatpush1.bf16.msra.mxu0 %v209
    %256 = vmatprep.subr.bf16.mxu0 0
    %257 = vmatpush1.bf16.msra.mxu0 %v210
    %258 = vmatprep.subr.bf16.mxu0 0
    %259 = vmatpush1.bf16.msra.mxu0 %v211
    %260 = vmatprep.mubr.bf16.mxu0 %v127
    %261 = vmatmul.mubr.bf16.gmra.mrb[0].mxu0 %v126
    %v262 = vpop.f32.mrb[0].mxu0
    %v263 = vadd.f32 %v131, %v262
    %v264 = vpop.f32.mrb[0].mxu0
    %v265 = vpop.f32.mrb[0].mxu0
    %v266 = vadd.f32 %v131, %v265
    %v267 = vpop.f32.mrb[0].mxu0
    %268 = vdwg.mxu0
    %vm269 = vcmask 261120
    %v270 = vsel %vm269, %v263, 0.0
    %271 = vadd.xlane.f32.xlu0 %v270
    %v272 = vpop.xlane.xlu0 %271
    %v273 = vsel %vm269, %v266, 0.0
    %274 = vadd.xlane.f32.xlu0 %v273
    %v275 = vpop.xlane.xlu0 %274
    %v276 = vrcp.pop 32.0
    %v277 = vmul.f32 %v272, %v276
    %v278 = vmul.f32 %v275, %v276
    %v279 = vsub.f32 %v263, %v277
    %v280 = vsub.f32 %v266, %v278
    %v281 = vmul.f32 %v279, %v279
    %v282 = vmul.f32 %v280, %v280
    %v283 = vsel %vm269, %v281, 0.0
    %284 = vadd.xlane.f32.xlu0 %v283
    %v285 = vpop.xlane.xlu0 %284
    %v286 = vsel %vm269, %v282, 0.0
    %287 = vadd.xlane.f32.xlu0 %v286
    %v288 = vpop.xlane.xlu0 %287
    %v289 = vmul.f32 %v285, %v276
    %v290 = vmul.f32 %v288, %v276
    %v291 = vadd.f32 %v289, 1e-05
    %v292 = vadd.f32 %v290, 1e-05
    %v293 = vrsqrt.pop %v291
    %v294 = vrsqrt.pop %v292
    %v295 = vmul.f32 %v279, %v293
    %v296 = vmul.f32 %v280, %v294
    %v297 = vlaneseq
    %v298 = vshrl.u32 %v297, 7
    %v299 = vsub.s32 0, %v298
    %v300 = vrot.slane %v82, %v299
    %v301 = vmul.f32 %v295, %v300
    %v302 = vmul.f32 %v296, %v300
    %v303 = vlaneseq
    %v304 = vshrl.u32 %v303, 7
    %v305 = vsub.s32 0, %v304
    %v306 = vrot.slane %v83, %v305
    %v307 = vadd.f32 %v301, %v306
    %v308 = vadd.f32 %v302, %v306
    %v309 = vmul.f32 %v307, 0.5
    %v310 = vmul.f32 %v308, 0.5
    %v311 = vrcp.pop 1.4142135
    %v312 = vmul.f32 %v307, %v311
    %v313 = vmul.f32 %v308, %v311
    %v314 = verf.f32.pop %v312
    %v315 = verf.f32.pop %v313
    %v316 = vadd.f32 %v314, 1.0
    %v317 = vadd.f32 %v315, 1.0
    %v318 = vmul.f32 %v309, %v316
    %v319 = vmul.f32 %v310, %v317
    %v320 = vpack.c.bf16 %v319, %v318
    %v321 = vlaneseq
    %v322 = vshrl.u32 %v321, 7
    %v323 = vsub.s32 0, %v322
    %v324 = vrot.slane %v78, %v323
    %v329 = vunpack.c.l.b16 %v58
    %v330 = vunpack.c.l.b16 %v59
    %v331 = vunpack.c.l.b16 %v60
    %v332 = vunpack.c.l.b16 %v61
    %v333 = vpack.c.b16 %v330, %v329
    %v334 = vpack.c.b16 %v332, %v331
    %v338 = vsel %vm269, %v320, 0
    %340 = vmatprep.subr.bf16.mxu0 0
    %341 = vmatpush1.bf16.msra.mxu0 %v333
    %342 = vmatprep.subr.bf16.mxu0 0
    %343 = vmatpush1.bf16.msra.mxu0 %v334
    %344 = vmatprep.subr.bf16.mxu0 0
    %345 = vmatpush1.bf16.msra.mxu0 0
    %346 = vmatprep.subr.bf16.mxu0 0
    %347 = vmatpush1.bf16.msra.mxu0 0
    %348 = vmatprep.subr.bf16.mxu0 0
    %349 = vmatpush1.bf16.msra.mxu0 0
    %350 = vmatprep.subr.bf16.mxu0 0
    %351 = vmatpush1.bf16.msra.mxu0 0
    %352 = vmatprep.subr.bf16.mxu0 0
    %353 = vmatpush1.bf16.msra.mxu0 0
    %354 = vmatprep.subr.bf16.mxu0 0
    %355 = vmatpush1.bf16.msra.mxu0 0
    %356 = vmatprep.subr.bf16.mxu0 0
    %357 = vmatpush1.bf16.msra.mxu0 0
    %358 = vmatprep.subr.bf16.mxu0 0
    %359 = vmatpush1.bf16.msra.mxu0 0
    %360 = vmatprep.subr.bf16.mxu0 0
    %361 = vmatpush1.bf16.msra.mxu0 0
    %362 = vmatprep.subr.bf16.mxu0 0
    %363 = vmatpush1.bf16.msra.mxu0 0
    %364 = vmatprep.subr.bf16.mxu0 0
    %365 = vmatpush1.bf16.msra.mxu0 0
    %366 = vmatprep.subr.bf16.mxu0 0
    %367 = vmatpush1.bf16.msra.mxu0 0
    %368 = vmatprep.subr.bf16.mxu0 0
    %369 = vmatpush1.bf16.msra.mxu0 0
    %370 = vmatprep.subr.bf16.mxu0 0
    %371 = vmatpush1.bf16.msra.mxu0 0
    %372 = vmatprep.mubr.bf16.mxu0 0
    %373 = vmatmul.mubr.bf16.gmra.mrb[0].mxu0 %v338
    %v374 = vpop.f32.mrb[0].mxu0
    %v375 = vadd.f32 %v324, %v374
    %v376 = vpop.f32.mrb[0].mxu0
    %v377 = vpop.f32.mrb[0].mxu0
    %v378 = vadd.f32 %v324, %v377
    %v379 = vpop.f32.mrb[0].mxu0
    %380 = vdwg.mxu0
    %v381 = vpack.c.bf16 0.0, 0.0
    %v394 = vunpack.c.l.b16 %v66
    %v395 = vunpack.c.h.b16 %v66
    %v396 = vunpack.c.l.b16 %v67
    %v397 = vunpack.c.h.b16 %v67
    %v398 = vunpack.c.l.b16 %v68
    %v399 = vunpack.c.h.b16 %v68
    %v400 = vunpack.c.l.b16 %v69
    %v401 = vunpack.c.h.b16 %v69
    %v402 = vunpack.c.l.b16 %v70
    %v403 = vunpack.c.h.b16 %v70
    %v404 = vunpack.c.l.b16 %v71
    %v405 = vunpack.c.h.b16 %v71
    %v406 = vunpack.c.l.b16 %v72
    %v407 = vunpack.c.h.b16 %v72
    %v408 = vunpack.c.l.b16 %v73
    %v409 = vunpack.c.h.b16 %v73
    %v410 = vunpack.c.l.b16 %v74
    %v411 = vunpack.c.h.b16 %v74
    %v412 = vunpack.c.l.b16 %v75
    %v413 = vunpack.c.h.b16 %v75
    %v414 = vunpack.c.l.b16 %v76
    %v415 = vunpack.c.h.b16 %v76
    %v416 = vunpack.c.l.b16 %v77
    %v417 = vunpack.c.h.b16 %v77
    %v418 = vpack.c.b16 %v396, %v394
    %v419 = vpack.c.b16 %v397, %v395
    %v420 = vpack.c.b16 %v400, %v398
    %v421 = vpack.c.b16 %v401, %v399
    %v422 = vpack.c.b16 %v404, %v402
    %v423 = vpack.c.b16 %v405, %v403
    %v424 = vpack.c.b16 %v408, %v406
    %v425 = vpack.c.b16 %v409, %v407
    %v426 = vpack.c.b16 %v412, %v410
    %v427 = vpack.c.b16 %v413, %v411
    %v428 = vpack.c.b16 %v416, %v414
    %v429 = vpack.c.b16 %v417, %v415
    %vm442 = vcmask 785408
    %v444 = vsel %vm442, %v381, 0
    %446 = vmatprep.subr.bf16.mxu0 %v419
    %447 = vmatpush1.bf16.msra.mxu0 %v418
    %448 = vmatprep.subr.bf16.mxu0 %v421
    %449 = vmatpush1.bf16.msra.mxu0 %v420
    %450 = vmatprep.subr.bf16.mxu0 %v423
    %451 = vmatpush1.bf16.msra.mxu0 %v422
    %452 = vmatprep.subr.bf16.mxu0 %v425
    %453 = vmatpush1.bf16.msra.mxu0 %v424
    %454 = vmatprep.subr.bf16.mxu0 %v427
    %455 = vmatpush1.bf16.msra.mxu0 %v426
    %456 = vmatprep.subr.bf16.mxu0 %v429
    %457 = vmatpush1.bf16.msra.mxu0 %v428
    %458 = vmatprep.subr.bf16.mxu0 0
    %459 = vmatpush1.bf16.msra.mxu0 0
    %460 = vmatprep.subr.bf16.mxu0 0
    %461 = vmatpush1.bf16.msra.mxu0 0
    %462 = vmatprep.subr.bf16.mxu0 0
    %463 = vmatpush1.bf16.msra.mxu0 0
    %464 = vmatprep.subr.bf16.mxu0 0
    %465 = vmatpush1.bf16.msra.mxu0 0
    %466 = vmatprep.subr.bf16.mxu0 0
    %467 = vmatpush1.bf16.msra.mxu0 0
    %468 = vmatprep.subr.bf16.mxu0 0
    %469 = vmatpush1.bf16.msra.mxu0 0
    %470 = vmatprep.subr.bf16.mxu0 0
    %471 = vmatpush1.bf16.msra.mxu0 0
    %472 = vmatprep.subr.bf16.mxu0 0
    %473 = vmatpush1.bf16.msra.mxu0 0
    %474 = vmatprep.subr.bf16.mxu0 0
    %475 = vmatpush1.bf16.msra.mxu0 0
    %476 = vmatprep.subr.bf16.mxu0 0
    %477 = vmatpush1.bf16.msra.mxu0 0
    %478 = vmatprep.mubr.bf16.mxu0 0
    %479 = vmatmul.mubr.bf16.gmra.mrb[0].mxu0 %v444
    %v480 = vpop.f32.mrb[0].mxu0
    %v481 = vadd.f32 0.0, %v480
    %v482 = vpop.f32.mrb[0].mxu0
    %v483 = vpop.f32.mrb[0].mxu0
    %v484 = vpop.f32.mrb[0].mxu0
    %485 = vdwg.mxu0
    %v486 = vadd.f32 %v375, %v481
    %v487 = vxor.u32 %v486, 2147483648
    %v488 = vmul.f32 %v487, 1.442695
    %v489 = vpow.pop %v488
    %v490 = vadd.f32 %v489, 1.0
    %v491 = vrcp.pop %v490
    %v492 = vmul.f32 1.0, %v491
    %v493 = vmul.f32 %v492, 0.0
    %v494 = vtanh.pop %v486
    %496 = vrot.lane.b32.xlu0 %v494, 64
    %v497 = vpop.permute.xlu0 %496
    %v499 = vmul.f32 %v492, %v497
    %501 = vrot.lane.b32.xlu0 %v499, 32
    %v502 = vpop.permute.xlu0 %501
    %v504 = vadd.f32 %v493, %v502
    %v505 = vtanh.pop %v504
    %507 = vrot.lane.b32.xlu0 %v505, 64
    %v508 = vpop.permute.xlu0 %507
    %v510 = vmul.f32 %v492, %v508
    %512 = vrot.lane.b32.xlu0 %v510, 32
    %v513 = vpop.permute.xlu0 %512
    %515 = vrot.lane.b32.xlu0 %v510, 64
    %v516 = vpop.permute.xlu0 %515
    %v518 = vsel %vm269, %v513, %v516
    %vm519 = vcmask 523264
    %v520 = vsel %vm519, %v518, 0.0
    %v521 = vpack.c.bf16 %v520, %v520
    %v523 = vsel %vm442, %v521, 0
    %525 = vmatprep.subr.bf16.mxu0 %v419
    %526 = vmatpush1.bf16.msra.mxu0 %v418
    %527 = vmatprep.subr.bf16.mxu0 %v421
    %528 = vmatpush1.bf16.msra.mxu0 %v420
    %529 = vmatprep.subr.bf16.mxu0 %v423
    %530 = vmatpush1.bf16.msra.mxu0 %v422
    %531 = vmatprep.subr.bf16.mxu0 %v425
    %532 = vmatpush1.bf16.msra.mxu0 %v424
    %533 = vmatprep.subr.bf16.mxu0 %v427
    %534 = vmatpush1.bf16.msra.mxu0 %v426
    %535 = vmatprep.subr.bf16.mxu0 %v429
    %536 = vmatpush1.bf16.msra.mxu0 %v428
    %537 = vmatprep.subr.bf16.mxu0 0
    %538 = vmatpush1.bf16.msra.mxu0 0
    %539 = vmatprep.subr.bf16.mxu0 0
    %540 = vmatpush1.bf16.msra.mxu0 0
    %541 = vmatprep.subr.bf16.mxu0 0
    %542 = vmatpush1.bf16.msra.mxu0 0
    %543 = vmatprep.subr.bf16.mxu0 0
    %544 = vmatpush1.bf16.msra.mxu0 0
    %545 = vmatprep.subr.bf16.mxu0 0
    %546 = vmatpush1.bf16.msra.mxu0 0
    %547 = vmatprep.subr.bf16.mxu0 0
    %548 = vmatpush1.bf16.msra.mxu0 0
    %549 = vmatprep.subr.bf16.mxu0 0
    %550 = vmatpush1.bf16.msra.mxu0 0
    %551 = vmatprep.subr.bf16.mxu0 0
    %552 = vmatpush1.bf16.msra.mxu0 0
    %553 = vmatprep.subr.bf16.mxu0 0
    %554 = vmatpush1.bf16.msra.mxu0 0
    %555 = vmatprep.subr.bf16.mxu0 0
    %556 = vmatpush1.bf16.msra.mxu0 0
    %557 = vmatprep.mubr.bf16.mxu0 0
    %558 = vmatmul.mubr.bf16.gmra.mrb[0].mxu0 %v523
    %v559 = vpop.f32.mrb[0].mxu0
    %v560 = vadd.f32 0.0, %v559
    %v561 = vpop.f32.mrb[0].mxu0
    %v562 = vadd.f32 0.0, %v561
    %v563 = vpop.f32.mrb[0].mxu0
    %v564 = vpop.f32.mrb[0].mxu0
    %565 = vdwg.mxu0
    %v567 = vrot.slane %v560, 6
    %v569 = vadd.f32 %v375, %v567
    %v570 = vxor.u32 %v569, 2147483648
    %v571 = vmul.f32 %v570, 1.442695
    %v572 = vpow.pop %v571
    %v573 = vadd.f32 %v572, 1.0
    %v574 = vrcp.pop %v573
    %v575 = vmul.f32 1.0, %v574
    %v577 = vrot.slane %v504, 6
    %v579 = vmul.f32 %v575, %v577
    %v580 = vtanh.pop %v569
    %582 = vrot.lane.b32.xlu0 %v580, 64
    %v583 = vpop.permute.xlu0 %582
    %v585 = vmul.f32 %v575, %v583
    %587 = vrot.lane.b32.xlu0 %v585, 32
    %v588 = vpop.permute.xlu0 %587
    %v590 = vadd.f32 %v579, %v588
    %v591 = vtanh.pop %v590
    %593 = vrot.lane.b32.xlu0 %v591, 64
    %v594 = vpop.permute.xlu0 %593
    %v596 = vmul.f32 %v575, %v594
    %v597 = vlaneseq
    %v598 = vshrl.u32 %v597, 7
    %v599 = vsub.s32 0, %v598
    %v600 = vrot.slane %v79, %v599
    %v601 = vadd.f32 %v562, %v600
    %v602 = vxor.u32 %v601, 2147483648
    %v603 = vmul.f32 %v602, 1.442695
    %v604 = vpow.pop %v603
    %v605 = vadd.f32 %v604, 1.0
    %v606 = vrcp.pop %v605
    %v607 = vmul.f32 1.0, %v606
    %v608 = vmul.f32 %v607, 0.0
    %v609 = vtanh.pop %v601
    %611 = vrot.lane.b32.xlu0 %v609, 64
    %v612 = vpop.permute.xlu0 %611
    %v614 = vmul.f32 %v607, %v612
    %616 = vrot.lane.b32.xlu0 %v614, 32
    %v617 = vpop.permute.xlu0 %616
    %v619 = vadd.f32 %v608, %v617
    %v620 = vtanh.pop %v619
    %622 = vrot.lane.b32.xlu0 %v620, 64
    %v623 = vpop.permute.xlu0 %622
    %v625 = vmul.f32 %v607, %v623
    %627 = vrot.lane.b32.xlu0 %v596, 32
    %v628 = vpop.permute.xlu0 %627
    %630 = vrot.lane.b32.xlu0 %v596, 64
    %v631 = vpop.permute.xlu0 %630
    %v634 = vrot.slane %v625, 6
    %635 = vrot.lane.b32.xlu0 %v634, 96
    %v636 = vpop.permute.xlu0 %635
    %v638 = vsel %vm269, %v628, %v631
    %v639 = vsel %vm519, %v638, %v636
    %v640 = vpack.c.bf16 %v639, %v639
    %v642 = vrot.slane %v640, 1
    %v644 = vsel %vm442, %v642, 0
    %646 = vmatprep.subr.bf16.mxu0 %v419
    %647 = vmatpush1.bf16.msra.mxu0 %v418
    %648 = vmatprep.subr.bf16.mxu0 %v421
    %649 = vmatpush1.bf16.msra.mxu0 %v420
    %650 = vmatprep.subr.bf16.mxu0 %v423
    %651 = vmatpush1.bf16.msra.mxu0 %v422
    %652 = vmatprep.subr.bf16.mxu0 %v425
    %653 = vmatpush1.bf16.msra.mxu0 %v424
    %654 = vmatprep.subr.bf16.mxu0 %v427
    %655 = vmatpush1.bf16.msra.mxu0 %v426
    %656 = vmatprep.subr.bf16.mxu0 %v429
    %657 = vmatpush1.bf16.msra.mxu0 %v428
    %658 = vmatprep.subr.bf16.mxu0 0
    %659 = vmatpush1.bf16.msra.mxu0 0
    %660 = vmatprep.subr.bf16.mxu0 0
    %661 = vmatpush1.bf16.msra.mxu0 0
    %662 = vmatprep.subr.bf16.mxu0 0
    %663 = vmatpush1.bf16.msra.mxu0 0
    %664 = vmatprep.subr.bf16.mxu0 0
    %665 = vmatpush1.bf16.msra.mxu0 0
    %666 = vmatprep.subr.bf16.mxu0 0
    %667 = vmatpush1.bf16.msra.mxu0 0
    %668 = vmatprep.subr.bf16.mxu0 0
    %669 = vmatpush1.bf16.msra.mxu0 0
    %670 = vmatprep.subr.bf16.mxu0 0
    %671 = vmatpush1.bf16.msra.mxu0 0
    %672 = vmatprep.subr.bf16.mxu0 0
    %673 = vmatpush1.bf16.msra.mxu0 0
    %674 = vmatprep.subr.bf16.mxu0 0
    %675 = vmatpush1.bf16.msra.mxu0 0
    %676 = vmatprep.subr.bf16.mxu0 0
    %677 = vmatpush1.bf16.msra.mxu0 0
    %678 = vmatprep.mubr.bf16.mxu0 0
    %679 = vmatmul.mubr.bf16.gmra.mrb[0].mxu0 %v644
    %v680 = vpop.f32.mrb[0].mxu0
    %v681 = vadd.f32 0.0, %v680
    %v682 = vpop.f32.mrb[0].mxu0
    %v683 = vadd.f32 0.0, %v682
    %v684 = vpop.f32.mrb[0].mxu0
    %v685 = vpop.f32.mrb[0].mxu0
    %686 = vdwg.mxu0
    %v688 = vrot.slane %v681, 4
    %v690 = vadd.f32 %v375, %v688
    %v691 = vxor.u32 %v690, 2147483648
    %v692 = vmul.f32 %v691, 1.442695
    %v693 = vpow.pop %v692
    %v694 = vadd.f32 %v693, 1.0
    %v695 = vrcp.pop %v694
    %v696 = vmul.f32 1.0, %v695
    %v698 = vrot.slane %v590, 6
    %v700 = vmul.f32 %v696, %v698
    %v701 = vtanh.pop %v690
    %703 = vrot.lane.b32.xlu0 %v701, 64
    %v704 = vpop.permute.xlu0 %703
    %v706 = vmul.f32 %v696, %v704
    %708 = vrot.lane.b32.xlu0 %v706, 32
    %v709 = vpop.permute.xlu0 %708
    %v711 = vadd.f32 %v700, %v709
    %v712 = vtanh.pop %v711
    %714 = vrot.lane.b32.xlu0 %v712, 64
    %v715 = vpop.permute.xlu0 %714
    %v717 = vmul.f32 %v696, %v715
    %v718 = vadd.f32 %v683, %v600
    %v719 = vxor.u32 %v718, 2147483648
    %v720 = vmul.f32 %v719, 1.442695
    %v721 = vpow.pop %v720
    %v722 = vadd.f32 %v721, 1.0
    %v723 = vrcp.pop %v722
    %v724 = vmul.f32 1.0, %v723
    %v725 = vmul.f32 %v724, %v619
    %v726 = vtanh.pop %v718
    %728 = vrot.lane.b32.xlu0 %v726, 64
    %v729 = vpop.permute.xlu0 %728
    %v731 = vmul.f32 %v724, %v729
    %733 = vrot.lane.b32.xlu0 %v731, 32
    %v734 = vpop.permute.xlu0 %733
    %v736 = vadd.f32 %v725, %v734
    %v737 = vtanh.pop %v736
    %739 = vrot.lane.b32.xlu0 %v737, 64
    %v740 = vpop.permute.xlu0 %739
    %v742 = vmul.f32 %v724, %v740
    %744 = vrot.lane.b32.xlu0 %v717, 32
    %v745 = vpop.permute.xlu0 %744
    %747 = vrot.lane.b32.xlu0 %v717, 64
    %v748 = vpop.permute.xlu0 %747
    %v751 = vrot.slane %v742, 4
    %752 = vrot.lane.b32.xlu0 %v751, 96
    %v753 = vpop.permute.xlu0 %752
    %v755 = vsel %vm269, %v745, %v748
    %v756 = vsel %vm519, %v755, %v753
    %v757 = vpack.c.bf16 %v756, %v756
    %v759 = vrot.slane %v757, 2
    %v761 = vsel %vm442, %v759, 0
    %763 = vmatprep.subr.bf16.mxu0 %v419
    %764 = vmatpush1.bf16.msra.mxu0 %v418
    %765 = vmatprep.subr.bf16.mxu0 %v421
    %766 = vmatpush1.bf16.msra.mxu0 %v420
    %767 = vmatprep.subr.bf16.mxu0 %v423
    %768 = vmatpush1.bf16.msra.mxu0 %v422
    %769 = vmatprep.subr.bf16.mxu0 %v425
    %770 = vmatpush1.bf16.msra.mxu0 %v424
    %771 = vmatprep.subr.bf16.mxu0 %v427
    %772 = vmatpush1.bf16.msra.mxu0 %v426
    %773 = vmatprep.subr.bf16.mxu0 %v429
    %774 = vmatpush1.bf16.msra.mxu0 %v428
    %775 = vmatprep.subr.bf16.mxu0 0
    %776 = vmatpush1.bf16.msra.mxu0 0
    %777 = vmatprep.subr.bf16.mxu0 0
    %778 = vmatpush1.bf16.msra.mxu0 0
    %779 = vmatprep.subr.bf16.mxu0 0
    %780 = vmatpush1.bf16.msra.mxu0 0
    %781 = vmatprep.subr.bf16.mxu0 0
    %782 = vmatpush1.bf16.msra.mxu0 0
    %783 = vmatprep.subr.bf16.mxu0 0
    %784 = vmatpush1.bf16.msra.mxu0 0
    %785 = vmatprep.subr.bf16.mxu0 0
    %786 = vmatpush1.bf16.msra.mxu0 0
    %787 = vmatprep.subr.bf16.mxu0 0
    %788 = vmatpush1.bf16.msra.mxu0 0
    %789 = vmatprep.subr.bf16.mxu0 0
    %790 = vmatpush1.bf16.msra.mxu0 0
    %791 = vmatprep.subr.bf16.mxu0 0
    %792 = vmatpush1.bf16.msra.mxu0 0
    %793 = vmatprep.subr.bf16.mxu0 0
    %794 = vmatpush1.bf16.msra.mxu0 0
    %795 = vmatprep.mubr.bf16.mxu0 0
    %796 = vmatmul.mubr.bf16.gmra.mrb[0].mxu0 %v761
    %v797 = vpop.f32.mrb[0].mxu0
    %v798 = vadd.f32 0.0, %v797
    %v799 = vpop.f32.mrb[0].mxu0
    %v800 = vadd.f32 0.0, %v799
    %v801 = vpop.f32.mrb[0].mxu0
    %v802 = vpop.f32.mrb[0].mxu0
    %803 = vdwg.mxu0
    %v805 = vrot.slane %v798, 2
    %v807 = vadd.f32 %v375, %v805
    %v808 = vxor.u32 %v807, 2147483648
    %v809 = vmul.f32 %v808, 1.442695
    %v810 = vpow.pop %v809
    %v811 = vadd.f32 %v810, 1.0
    %v812 = vrcp.pop %v811
    %v813 = vmul.f32 1.0, %v812
    %v815 = vrot.slane %v711, 6
    %v817 = vmul.f32 %v813, %v815
    %v818 = vtanh.pop %v807
    %820 = vrot.lane.b32.xlu0 %v818, 64
    %v821 = vpop.permute.xlu0 %820
    %v823 = vmul.f32 %v813, %v821
    %825 = vrot.lane.b32.xlu0 %v823, 32
    %v826 = vpop.permute.xlu0 %825
    %v828 = vadd.f32 %v817, %v826
    %v829 = vtanh.pop %v828
    %831 = vrot.lane.b32.xlu0 %v829, 64
    %v832 = vpop.permute.xlu0 %831
    %v834 = vmul.f32 %v813, %v832
    %v835 = vadd.f32 %v800, %v600
    %v836 = vxor.u32 %v835, 2147483648
    %v837 = vmul.f32 %v836, 1.442695
    %v838 = vpow.pop %v837
    %v839 = vadd.f32 %v838, 1.0
    %v840 = vrcp.pop %v839
    %v841 = vmul.f32 1.0, %v840
    %v842 = vmul.f32 %v841, %v736
    %v843 = vtanh.pop %v835
    %845 = vrot.lane.b32.xlu0 %v843, 64
    %v846 = vpop.permute.xlu0 %845
    %v848 = vmul.f32 %v841, %v846
    %850 = vrot.lane.b32.xlu0 %v848, 32
    %v851 = vpop.permute.xlu0 %850
    %v853 = vadd.f32 %v842, %v851
    %v854 = vtanh.pop %v853
    %856 = vrot.lane.b32.xlu0 %v854, 64
    %v857 = vpop.permute.xlu0 %856
    %v859 = vmul.f32 %v841, %v857
    %861 = vrot.lane.b32.xlu0 %v834, 32
    %v862 = vpop.permute.xlu0 %861
    %864 = vrot.lane.b32.xlu0 %v834, 64
    %v865 = vpop.permute.xlu0 %864
    %v868 = vrot.slane %v859, 2
    %869 = vrot.lane.b32.xlu0 %v868, 96
    %v870 = vpop.permute.xlu0 %869
    %v872 = vsel %vm269, %v862, %v865
    %v873 = vsel %vm519, %v872, %v870
    %v874 = vpack.c.bf16 %v873, %v873
    %v876 = vrot.slane %v874, 3
    %v878 = vsel %vm442, %v876, 0
    %880 = vmatprep.subr.bf16.mxu0 %v419
    %881 = vmatpush1.bf16.msra.mxu0 %v418
    %882 = vmatprep.subr.bf16.mxu0 %v421
    %883 = vmatpush1.bf16.msra.mxu0 %v420
    %884 = vmatprep.subr.bf16.mxu0 %v423
    %885 = vmatpush1.bf16.msra.mxu0 %v422
    %886 = vmatprep.subr.bf16.mxu0 %v425
    %887 = vmatpush1.bf16.msra.mxu0 %v424
    %888 = vmatprep.subr.bf16.mxu0 %v427
    %889 = vmatpush1.bf16.msra.mxu0 %v426
    %890 = vmatprep.subr.bf16.mxu0 %v429
    %891 = vmatpush1.bf16.msra.mxu0 %v428
    %892 = vmatprep.subr.bf16.mxu0 0
    %893 = vmatpush1.bf16.msra.mxu0 0
    %894 = vmatprep.subr.bf16.mxu0 0
    %895 = vmatpush1.bf16.msra.mxu0 0
    %896 = vmatprep.subr.bf16.mxu0 0
    %897 = vmatpush1.bf16.msra.mxu0 0
    %898 = vmatprep.subr.bf16.mxu0 0
    %899 = vmatpush1.bf16.msra.mxu0 0
    %900 = vmatprep.subr.bf16.mxu0 0
    %901 = vmatpush1.bf16.msra.mxu0 0
    %902 = vmatprep.subr.bf16.mxu0 0
    %903 = vmatpush1.bf16.msra.mxu0 0
    %904 = vmatprep.subr.bf16.mxu0 0
    %905 = vmatpush1.bf16.msra.mxu0 0
    %906 = vmatprep.subr.bf16.mxu0 0
    %907 = vmatpush1.bf16.msra.mxu0 0
    %908 = vmatprep.subr.bf16.mxu0 0
    %909 = vmatpush1.bf16.msra.mxu0 0
    %910 = vmatprep.subr.bf16.mxu0 0
    %911 = vmatpush1.bf16.msra.mxu0 0
    %912 = vmatprep.mubr.bf16.mxu0 0
    %913 = vmatmul.mubr.bf16.gmra.mrb[0].mxu0 %v878
    %v914 = vpop.f32.mrb[0].mxu0
    %v915 = vadd.f32 0.0, %v914
    %v916 = vpop.f32.mrb[0].mxu0
    %v917 = vadd.f32 0.0, %v916
    %v918 = vpop.f32.mrb[0].mxu0
    %v919 = vpop.f32.mrb[0].mxu0
    %920 = vdwg.mxu0
    %v921 = vadd.f32 %v378, %v915
    %v922 = vxor.u32 %v921, 2147483648
    %v923 = vmul.f32 %v922, 1.442695
    %v924 = vpow.pop %v923
    %v925 = vadd.f32 %v924, 1.0
    %v926 = vrcp.pop %v925
    %v927 = vmul.f32 1.0, %v926
    %v929 = vrot.slane %v828, 6
    %v931 = vmul.f32 %v927, %v929
    %v932 = vtanh.pop %v921
    %934 = vrot.lane.b32.xlu0 %v932, 64
    %v935 = vpop.permute.xlu0 %934
    %v937 = vmul.f32 %v927, %v935
    %939 = vrot.lane.b32.xlu0 %v937, 32
    %v940 = vpop.permute.xlu0 %939
    %v942 = vadd.f32 %v931, %v940
    %v943 = vtanh.pop %v942
    %945 = vrot.lane.b32.xlu0 %v943, 64
    %v946 = vpop.permute.xlu0 %945
    %v948 = vmul.f32 %v927, %v946
    %v949 = vadd.f32 %v917, %v600
    %v950 = vxor.u32 %v949, 2147483648
    %v951 = vmul.f32 %v950, 1.442695
    %v952 = vpow.pop %v951
    %v953 = vadd.f32 %v952, 1.0
    %v954 = vrcp.pop %v953
    %v955 = vmul.f32 1.0, %v954
    %v956 = vmul.f32 %v955, %v853
    %v957 = vtanh.pop %v949
    %959 = vrot.lane.b32.xlu0 %v957, 64
    %v960 = vpop.permute.xlu0 %959
    %v962 = vmul.f32 %v955, %v960
    %964 = vrot.lane.b32.xlu0 %v962, 32
    %v965 = vpop.permute.xlu0 %964
    %v967 = vadd.f32 %v956, %v965
    %v968 = vtanh.pop %v967
    %970 = vrot.lane.b32.xlu0 %v968, 64
    %v971 = vpop.permute.xlu0 %970
    %v973 = vmul.f32 %v955, %v971
    %975 = vrot.lane.b32.xlu0 %v948, 32
    %v976 = vpop.permute.xlu0 %975
    %978 = vrot.lane.b32.xlu0 %v948, 64
    %v979 = vpop.permute.xlu0 %978
    %982 = vrot.lane.b32.xlu0 %v973, 96
    %v983 = vpop.permute.xlu0 %982
    %v985 = vsel %vm269, %v976, %v979
    %v986 = vsel %vm519, %v985, %v983
    %v987 = vpack.c.bf16 %v986, %v986
    %v989 = vsel %vm442, %v987, 0
    %991 = vmatprep.subr.bf16.mxu0 %v419
    %992 = vmatpush1.bf16.msra.mxu0 %v418
    %993 = vmatprep.subr.bf16.mxu0 %v421
    %994 = vmatpush1.bf16.msra.mxu0 %v420
    %995 = vmatprep.subr.bf16.mxu0 %v423
    %996 = vmatpush1.bf16.msra.mxu0 %v422
    %997 = vmatprep.subr.bf16.mxu0 %v425
    %998 = vmatpush1.bf16.msra.mxu0 %v424
    %999 = vmatprep.subr.bf16.mxu0 %v427
    %1000 = vmatpush1.bf16.msra.mxu0 %v426
    %1001 = vmatprep.subr.bf16.mxu0 %v429
    %1002 = vmatpush1.bf16.msra.mxu0 %v428
    %1003 = vmatprep.subr.bf16.mxu0 0
    %1004 = vmatpush1.bf16.msra.mxu0 0
    %1005 = vmatprep.subr.bf16.mxu0 0
    %1006 = vmatpush1.bf16.msra.mxu0 0
    %1007 = vmatprep.subr.bf16.mxu0 0
    %1008 = vmatpush1.bf16.msra.mxu0 0
    %1009 = vmatprep.subr.bf16.mxu0 0
    %1010 = vmatpush1.bf16.msra.mxu0 0
    %1011 = vmatprep.subr.bf16.mxu0 0
    %1012 = vmatpush1.bf16.msra.mxu0 0
    %1013 = vmatprep.subr.bf16.mxu0 0
    %1014 = vmatpush1.bf16.msra.mxu0 0
    %1015 = vmatprep.subr.bf16.mxu0 0
    %1016 = vmatpush1.bf16.msra.mxu0 0
    %1017 = vmatprep.subr.bf16.mxu0 0
    %1018 = vmatpush1.bf16.msra.mxu0 0
    %1019 = vmatprep.subr.bf16.mxu0 0
    %1020 = vmatpush1.bf16.msra.mxu0 0
    %1021 = vmatprep.subr.bf16.mxu0 0
    %1022 = vmatpush1.bf16.msra.mxu0 0
    %1023 = vmatprep.mubr.bf16.mxu0 0
    %1024 = vmatmul.mubr.bf16.gmra.mrb[0].mxu0 %v989
    %v1025 = vpop.f32.mrb[0].mxu0
    %v1026 = vadd.f32 0.0, %v1025
    %v1027 = vpop.f32.mrb[0].mxu0
    %v1028 = vadd.f32 0.0, %v1027
    %v1029 = vpop.f32.mrb[0].mxu0
    %v1030 = vpop.f32.mrb[0].mxu0
    %1031 = vdwg.mxu0
    %v1033 = vrot.slane %v1026, 6
    %v1035 = vadd.f32 %v378, %v1033
    %v1036 = vxor.u32 %v1035, 2147483648
    %v1037 = vmul.f32 %v1036, 1.442695
    %v1038 = vpow.pop %v1037
    %v1039 = vadd.f32 %v1038, 1.0
    %v1040 = vrcp.pop %v1039
    %v1041 = vmul.f32 1.0, %v1040
    %v1043 = vrot.slane %v942, 6
    %v1045 = vmul.f32 %v1041, %v1043
    %v1046 = vtanh.pop %v1035
    %1048 = vrot.lane.b32.xlu0 %v1046, 64
    %v1049 = vpop.permute.xlu0 %1048
    %v1051 = vmul.f32 %v1041, %v1049
    %1053 = vrot.lane.b32.xlu0 %v1051, 32
    %v1054 = vpop.permute.xlu0 %1053
    %v1056 = vadd.f32 %v1045, %v1054
    %v1057 = vtanh.pop %v1056
    %1059 = vrot.lane.b32.xlu0 %v1057, 64
    %v1060 = vpop.permute.xlu0 %1059
    %v1062 = vmul.f32 %v1041, %v1060
    %v1063 = vadd.f32 %v1028, %v600
    %v1064 = vxor.u32 %v1063, 2147483648
    %v1065 = vmul.f32 %v1064, 1.442695
    %v1066 = vpow.pop %v1065
    %v1067 = vadd.f32 %v1066, 1.0
    %v1068 = vrcp.pop %v1067
    %v1069 = vmul.f32 1.0, %v1068
    %v1070 = vmul.f32 %v1069, %v967
    %v1071 = vtanh.pop %v1063
    %1073 = vrot.lane.b32.xlu0 %v1071, 64
    %v1074 = vpop.permute.xlu0 %1073
    %v1076 = vmul.f32 %v1069, %v1074
    %1078 = vrot.lane.b32.xlu0 %v1076, 32
    %v1079 = vpop.permute.xlu0 %1078
    %v1081 = vadd.f32 %v1070, %v1079
    %v1082 = vtanh.pop %v1081
    %1084 = vrot.lane.b32.xlu0 %v1082, 64
    %v1085 = vpop.permute.xlu0 %1084
    %v1087 = vmul.f32 %v1069, %v1085
    %1089 = vrot.lane.b32.xlu0 %v1062, 32
    %v1090 = vpop.permute.xlu0 %1089
    %1092 = vrot.lane.b32.xlu0 %v1062, 64
    %v1093 = vpop.permute.xlu0 %1092
    %v1096 = vrot.slane %v1087, 6
    %1097 = vrot.lane.b32.xlu0 %v1096, 96
    %v1098 = vpop.permute.xlu0 %1097
    %v1100 = vsel %vm269, %v1090, %v1093
    %v1101 = vsel %vm519, %v1100, %v1098
    %v1102 = vpack.c.bf16 %v1101, %v1101
    %v1104 = vrot.slane %v1102, 1
    %v1106 = vsel %vm442, %v1104, 0
    %1108 = vmatprep.subr.bf16.mxu0 %v419
    %1109 = vmatpush1.bf16.msra.mxu0 %v418
    %1110 = vmatprep.subr.bf16.mxu0 %v421
    %1111 = vmatpush1.bf16.msra.mxu0 %v420
    %1112 = vmatprep.subr.bf16.mxu0 %v423
    %1113 = vmatpush1.bf16.msra.mxu0 %v422
    %1114 = vmatprep.subr.bf16.mxu0 %v425
    %1115 = vmatpush1.bf16.msra.mxu0 %v424
    %1116 = vmatprep.subr.bf16.mxu0 %v427
    %1117 = vmatpush1.bf16.msra.mxu0 %v426
    %1118 = vmatprep.subr.bf16.mxu0 %v429
    %1119 = vmatpush1.bf16.msra.mxu0 %v428
    %1120 = vmatprep.subr.bf16.mxu0 0
    %1121 = vmatpush1.bf16.msra.mxu0 0
    %1122 = vmatprep.subr.bf16.mxu0 0
    %1123 = vmatpush1.bf16.msra.mxu0 0
    %1124 = vmatprep.subr.bf16.mxu0 0
    %1125 = vmatpush1.bf16.msra.mxu0 0
    %1126 = vmatprep.subr.bf16.mxu0 0
    %1127 = vmatpush1.bf16.msra.mxu0 0
    %1128 = vmatprep.subr.bf16.mxu0 0
    %1129 = vmatpush1.bf16.msra.mxu0 0
    %1130 = vmatprep.subr.bf16.mxu0 0
    %1131 = vmatpush1.bf16.msra.mxu0 0
    %1132 = vmatprep.subr.bf16.mxu0 0
    %1133 = vmatpush1.bf16.msra.mxu0 0
    %1134 = vmatprep.subr.bf16.mxu0 0
    %1135 = vmatpush1.bf16.msra.mxu0 0
    %1136 = vmatprep.subr.bf16.mxu0 0
    %1137 = vmatpush1.bf16.msra.mxu0 0
    %1138 = vmatprep.subr.bf16.mxu0 0
    %1139 = vmatpush1.bf16.msra.mxu0 0
    %1140 = vmatprep.mubr.bf16.mxu0 0
    %1141 = vmatmul.mubr.bf16.gmra.mrb[0].mxu0 %v1106
    %v1142 = vpop.f32.mrb[0].mxu0
    %v1143 = vadd.f32 0.0, %v1142
    %v1144 = vpop.f32.mrb[0].mxu0
    %v1145 = vadd.f32 0.0, %v1144
    %v1146 = vpop.f32.mrb[0].mxu0
    %v1147 = vpop.f32.mrb[0].mxu0
    %1148 = vdwg.mxu0
    %v1150 = vrot.slane %v1143, 4
    %v1152 = vadd.f32 %v378, %v1150
    %v1153 = vxor.u32 %v1152, 2147483648
    %v1154 = vmul.f32 %v1153, 1.442695
    %v1155 = vpow.pop %v1154
    %v1156 = vadd.f32 %v1155, 1.0
    %v1157 = vrcp.pop %v1156
    %v1158 = vmul.f32 1.0, %v1157
    %v1160 = vrot.slane %v1056, 6
    %v1162 = vmul.f32 %v1158, %v1160
    %v1163 = vtanh.pop %v1152
    %1165 = vrot.lane.b32.xlu0 %v1163, 64
    %v1166 = vpop.permute.xlu0 %1165
    %v1168 = vmul.f32 %v1158, %v1166
    %1170 = vrot.lane.b32.xlu0 %v1168, 32
    %v1171 = vpop.permute.xlu0 %1170
    %v1173 = vadd.f32 %v1162, %v1171
    %v1174 = vtanh.pop %v1173
    %1176 = vrot.lane.b32.xlu0 %v1174, 64
    %v1177 = vpop.permute.xlu0 %1176
    %v1179 = vmul.f32 %v1158, %v1177
    %v1180 = vadd.f32 %v1145, %v600
    %v1181 = vxor.u32 %v1180, 2147483648
    %v1182 = vmul.f32 %v1181, 1.442695
    %v1183 = vpow.pop %v1182
    %v1184 = vadd.f32 %v1183, 1.0
    %v1185 = vrcp.pop %v1184
    %v1186 = vmul.f32 1.0, %v1185
    %v1187 = vmul.f32 %v1186, %v1081
    %v1188 = vtanh.pop %v1180
    %1190 = vrot.lane.b32.xlu0 %v1188, 64
    %v1191 = vpop.permute.xlu0 %1190
    %v1193 = vmul.f32 %v1186, %v1191
    %1195 = vrot.lane.b32.xlu0 %v1193, 32
    %v1196 = vpop.permute.xlu0 %1195
    %v1198 = vadd.f32 %v1187, %v1196
    %v1199 = vtanh.pop %v1198
    %1201 = vrot.lane.b32.xlu0 %v1199, 64
    %v1202 = vpop.permute.xlu0 %1201
    %v1204 = vmul.f32 %v1186, %v1202
    %1206 = vrot.lane.b32.xlu0 %v1179, 32
    %v1207 = vpop.permute.xlu0 %1206
    %1209 = vrot.lane.b32.xlu0 %v1179, 64
    %v1210 = vpop.permute.xlu0 %1209
    %v1213 = vrot.slane %v1204, 4
    %1214 = vrot.lane.b32.xlu0 %v1213, 96
    %v1215 = vpop.permute.xlu0 %1214
    %v1217 = vsel %vm269, %v1207, %v1210
    %v1218 = vsel %vm519, %v1217, %v1215
    %v1219 = vpack.c.bf16 %v1218, %v1218
    %v1221 = vrot.slane %v1219, 2
    %v1223 = vsel %vm442, %v1221, 0
    %1225 = vmatprep.subr.bf16.mxu0 %v419
    %1226 = vmatpush1.bf16.msra.mxu0 %v418
    %1227 = vmatprep.subr.bf16.mxu0 %v421
    %1228 = vmatpush1.bf16.msra.mxu0 %v420
    %1229 = vmatprep.subr.bf16.mxu0 %v423
    %1230 = vmatpush1.bf16.msra.mxu0 %v422
    %1231 = vmatprep.subr.bf16.mxu0 %v425
    %1232 = vmatpush1.bf16.msra.mxu0 %v424
    %1233 = vmatprep.subr.bf16.mxu0 %v427
    %1234 = vmatpush1.bf16.msra.mxu0 %v426
    %1235 = vmatprep.subr.bf16.mxu0 %v429
    %1236 = vmatpush1.bf16.msra.mxu0 %v428
    %1237 = vmatprep.subr.bf16.mxu0 0
    %1238 = vmatpush1.bf16.msra.mxu0 0
    %1239 = vmatprep.subr.bf16.mxu0 0
    %1240 = vmatpush1.bf16.msra.mxu0 0
    %1241 = vmatprep.subr.bf16.mxu0 0
    %1242 = vmatpush1.bf16.msra.mxu0 0
    %1243 = vmatprep.subr.bf16.mxu0 0
    %1244 = vmatpush1.bf16.msra.mxu0 0
    %1245 = vmatprep.subr.bf16.mxu0 0
    %1246 = vmatpush1.bf16.msra.mxu0 0
    %1247 = vmatprep.subr.bf16.mxu0 0
    %1248 = vmatpush1.bf16.msra.mxu0 0
    %1249 = vmatprep.subr.bf16.mxu0 0
    %1250 = vmatpush1.bf16.msra.mxu0 0
    %1251 = vmatprep.subr.bf16.mxu0 0
    %1252 = vmatpush1.bf16.msra.mxu0 0
    %1253 = vmatprep.subr.bf16.mxu0 0
    %1254 = vmatpush1.bf16.msra.mxu0 0
    %1255 = vmatprep.subr.bf16.mxu0 0
    %1256 = vmatpush1.bf16.msra.mxu0 0
    %1257 = vmatprep.mubr.bf16.mxu0 0
    %1258 = vmatmul.mubr.bf16.gmra.mrb[0].mxu0 %v1223
    %v1259 = vpop.f32.mrb[0].mxu0
    %v1260 = vadd.f32 0.0, %v1259
    %v1261 = vpop.f32.mrb[0].mxu0
    %v1262 = vadd.f32 0.0, %v1261
    %v1263 = vpop.f32.mrb[0].mxu0
    %v1264 = vpop.f32.mrb[0].mxu0
    %1265 = vdwg.mxu0
    %v1267 = vrot.slane %v1260, 2
    %v1269 = vadd.f32 %v378, %v1267
    %v1270 = vxor.u32 %v1269, 2147483648
    %v1271 = vmul.f32 %v1270, 1.442695
    %v1272 = vpow.pop %v1271
    %v1273 = vadd.f32 %v1272, 1.0
    %v1274 = vrcp.pop %v1273
    %v1275 = vmul.f32 1.0, %v1274
    %v1277 = vrot.slane %v1173, 6
    %v1279 = vmul.f32 %v1275, %v1277
    %v1280 = vtanh.pop %v1269
    %1282 = vrot.lane.b32.xlu0 %v1280, 64
    %v1283 = vpop.permute.xlu0 %1282
    %v1285 = vmul.f32 %v1275, %v1283
    %1287 = vrot.lane.b32.xlu0 %v1285, 32
    %v1288 = vpop.permute.xlu0 %1287
    %v1290 = vadd.f32 %v1279, %v1288
    %v1291 = vtanh.pop %v1290
    %1293 = vrot.lane.b32.xlu0 %v1291, 64
    %v1294 = vpop.permute.xlu0 %1293
    %v1296 = vmul.f32 %v1275, %v1294
    %v1297 = vadd.f32 %v1262, %v600
    %v1298 = vxor.u32 %v1297, 2147483648
    %v1299 = vmul.f32 %v1298, 1.442695
    %v1300 = vpow.pop %v1299
    %v1301 = vadd.f32 %v1300, 1.0
    %v1302 = vrcp.pop %v1301
    %v1303 = vmul.f32 1.0, %v1302
    %v1304 = vmul.f32 %v1303, %v1198
    %v1305 = vtanh.pop %v1297
    %1307 = vrot.lane.b32.xlu0 %v1305, 64
    %v1308 = vpop.permute.xlu0 %1307
    %v1310 = vmul.f32 %v1303, %v1308
    %1312 = vrot.lane.b32.xlu0 %v1310, 32
    %v1313 = vpop.permute.xlu0 %1312
    %v1315 = vadd.f32 %v1304, %v1313
    %v1316 = vtanh.pop %v1315
    %1318 = vrot.lane.b32.xlu0 %v1316, 64
    %v1319 = vpop.permute.xlu0 %1318
    %v1321 = vmul.f32 %v1303, %v1319
    %1323 = vrot.lane.b32.xlu0 %v1296, 32
    %v1324 = vpop.permute.xlu0 %1323
    %1326 = vrot.lane.b32.xlu0 %v1296, 64
    %v1327 = vpop.permute.xlu0 %1326
    %v1330 = vrot.slane %v1321, 2
    %1331 = vrot.lane.b32.xlu0 %v1330, 96
    %v1332 = vpop.permute.xlu0 %1331
    %v1334 = vsel %vm269, %v1324, %v1327
    %v1335 = vsel %vm519, %v1334, %v1332
    %v1336 = vpack.c.bf16 %v1335, %v1335
    %v1338 = vrot.slane %v1336, 3
    %v1340 = vsel %vm442, %v1338, 0
    %1342 = vmatprep.subr.bf16.mxu0 %v419
    %1343 = vmatpush1.bf16.msra.mxu0 %v418
    %1344 = vmatprep.subr.bf16.mxu0 %v421
    %1345 = vmatpush1.bf16.msra.mxu0 %v420
    %1346 = vmatprep.subr.bf16.mxu0 %v423
    %1347 = vmatpush1.bf16.msra.mxu0 %v422
    %1348 = vmatprep.subr.bf16.mxu0 %v425
    %1349 = vmatpush1.bf16.msra.mxu0 %v424
    %1350 = vmatprep.subr.bf16.mxu0 %v427
    %1351 = vmatpush1.bf16.msra.mxu0 %v426
    %1352 = vmatprep.subr.bf16.mxu0 %v429
    %1353 = vmatpush1.bf16.msra.mxu0 %v428
    %1354 = vmatprep.subr.bf16.mxu0 0
    %1355 = vmatpush1.bf16.msra.mxu0 0
    %1356 = vmatprep.subr.bf16.mxu0 0
    %1357 = vmatpush1.bf16.msra.mxu0 0
    %1358 = vmatprep.subr.bf16.mxu0 0
    %1359 = vmatpush1.bf16.msra.mxu0 0
    %1360 = vmatprep.subr.bf16.mxu0 0
    %1361 = vmatpush1.bf16.msra.mxu0 0
    %1362 = vmatprep.subr.bf16.mxu0 0
    %1363 = vmatpush1.bf16.msra.mxu0 0
    %1364 = vmatprep.subr.bf16.mxu0 0
    %1365 = vmatpush1.bf16.msra.mxu0 0
    %1366 = vmatprep.subr.bf16.mxu0 0
    %1367 = vmatpush1.bf16.msra.mxu0 0
    %1368 = vmatprep.subr.bf16.mxu0 0
    %1369 = vmatpush1.bf16.msra.mxu0 0
    %1370 = vmatprep.subr.bf16.mxu0 0
    %1371 = vmatpush1.bf16.msra.mxu0 0
    %1372 = vmatprep.subr.bf16.mxu0 0
    %1373 = vmatpush1.bf16.msra.mxu0 0
    %1374 = vmatprep.mubr.bf16.mxu0 0
    %1375 = vmatmul.mubr.bf16.gmra.mrb[0].mxu0 %v1340
    %v1376 = vpop.f32.mrb[0].mxu0
    %v1377 = vpop.f32.mrb[0].mxu0
    %v1378 = vadd.f32 0.0, %v1377
    %v1379 = vpop.f32.mrb[0].mxu0
    %v1380 = vpop.f32.mrb[0].mxu0
    %1381 = vdwg.mxu0
    %v1382 = vadd.f32 %v1378, %v600
    %v1383 = vxor.u32 %v1382, 2147483648
    %v1384 = vmul.f32 %v1383, 1.442695
    %v1385 = vpow.pop %v1384
    %v1386 = vadd.f32 %v1385, 1.0
    %v1387 = vrcp.pop %v1386
    %v1388 = vmul.f32 1.0, %v1387
    %v1389 = vmul.f32 %v1388, %v1315
    %v1390 = vtanh.pop %v1382
    %1392 = vrot.lane.b32.xlu0 %v1390, 64
    %v1393 = vpop.permute.xlu0 %1392
    %v1395 = vmul.f32 %v1388, %v1393
    %1397 = vrot.lane.b32.xlu0 %v1395, 32
    %v1398 = vpop.permute.xlu0 %1397
    %v1400 = vadd.f32 %v1389, %v1398
    %v1401 = vtanh.pop %v1400
    %1403 = vrot.lane.b32.xlu0 %v1401, 64
    %v1404 = vpop.permute.xlu0 %1403
    %v1406 = vmul.f32 %v1388, %v1404
    %v1407 = vrot.slane %v742, 7
    %v1409 = vrot.slane %v859, 6
    %v1411 = vrot.slane %v973, 5
    %v1413 = vrot.slane %v1087, 4
    %v1415 = vrot.slane %v1204, 3
    %v1419 = vrot.slane %v1406, 1
    %v1421 = vrot.slane %v625, 1
    %v1423 = vrot.slane %v859, 7
    %v1425 = vrot.slane %v973, 6
    %v1427 = vrot.slane %v1087, 5
    %v1430 = vrot.slane %v1321, 3
    %v1432 = vrot.slane %v1406, 2
    %vm1434 = vcmask 1040384
    %v1435 = vsel %vm1434, %v625, %v1407
    %v1436 = vsel %vm93, %v1435, %v1409
    %vm1437 = vcmask 1042432
    %v1438 = vsel %vm1437, %v1436, %v1411
    %v1439 = vsel %vm95, %v1438, %v1413
    %vm1440 = vcmask 1044480
    %v1441 = vsel %vm1440, %v1439, %v1415
    %v1442 = vsel %vm97, %v1441, %v1330
    %vm1443 = vcmask 1046528
    %v1444 = vsel %vm1443, %v1442, %v1419
    %v1445 = vsel %vm1434, %v1421, %v742
    %v1446 = vsel %vm93, %v1445, %v1423
    %v1447 = vsel %vm1437, %v1446, %v1425
    %v1448 = vsel %vm95, %v1447, %v1427
    %v1449 = vsel %vm1440, %v1448, %v1213
    %v1450 = vsel %vm97, %v1449, %v1430
    %v1451 = vsel %vm1443, %v1450, %v1432
    %1454 = vrot.lane.b32.xlu0 %v1444, 32
    %v1455 = vpop.permute.xlu0 %1454
    %1456 = vrot.lane.b32.xlu0 %v1451, 32
    %v1457 = vpop.permute.xlu0 %1456
    %v1460 = vsel %vm269, %v1455, 0.0
    %1461 = vadd.xlane.f32.xlu0 %v1460
    %v1462 = vpop.xlane.xlu0 %1461
    %v1463 = vsel %vm269, %v1457, 0.0
    %1464 = vadd.xlane.f32.xlu0 %v1463
    %v1465 = vpop.xlane.xlu0 %1464
    %v1466 = vmul.f32 %v1462, %v276
    %v1467 = vmul.f32 %v1465, %v276
    %v1468 = vsub.f32 %v1444, %v1466
    %v1469 = vsub.f32 %v1451, %v1467
    %v1470 = vmul.f32 %v1468, %v1468
    %v1471 = vmul.f32 %v1469, %v1469
    %1474 = vrot.lane.b32.xlu0 %v1470, 32
    %v1475 = vpop.permute.xlu0 %1474
    %1476 = vrot.lane.b32.xlu0 %v1471, 32
    %v1477 = vpop.permute.xlu0 %1476
    %v1480 = vsel %vm269, %v1475, 0.0
    %1481 = vadd.xlane.f32.xlu0 %v1480
    %v1482 = vpop.xlane.xlu0 %1481
    %v1483 = vsel %vm269, %v1477, 0.0
    %1484 = vadd.xlane.f32.xlu0 %v1483
    %v1485 = vpop.xlane.xlu0 %1484
    %v1486 = vmul.f32 %v1482, %v276
    %v1487 = vmul.f32 %v1485, %v276
    %v1488 = vadd.f32 %v1486, 1e-05
    %v1489 = vadd.f32 %v1487, 1e-05
    %v1490 = vrsqrt.pop %v1488
    %v1491 = vrsqrt.pop %v1489
    %v1492 = vmul.f32 %v1468, %v1490
    %v1493 = vmul.f32 %v1469, %v1491
    %v1494 = vlaneseq
    %v1495 = vshrl.u32 %v1494, 7
    %v1496 = vsub.s32 0, %v1495
    %v1497 = vrot.slane %v84, %v1496
    %1499 = vrot.lane.b32.xlu0 %v1497, 96
    %v1500 = vpop.permute.xlu0 %1499
    %v1502 = vmul.f32 %v1492, %v1500
    %v1503 = vmul.f32 %v1493, %v1500
    %v1504 = vlaneseq
    %v1505 = vshrl.u32 %v1504, 7
    %v1506 = vsub.s32 0, %v1505
    %v1507 = vrot.slane %v85, %v1506
    %1509 = vrot.lane.b32.xlu0 %v1507, 96
    %v1510 = vpop.permute.xlu0 %1509
    %v1512 = vadd.f32 %v1502, %v1510
    %v1513 = vadd.f32 %v1503, %v1510
    %v1514 = vpack.c.bf16 %v1513, %v1512
    %v1515 = vlaneseq
    %v1516 = vshrl.u32 %v1515, 7
    %v1517 = vsub.s32 0, %v1516
    %v1518 = vrot.slane %v86, %v1517
    %1520 = vrot.lane.b32.xlu0 %v1514, 32
    %v1521 = vpop.permute.xlu0 %1520
    %v1526 = vunpack.c.l.b16 %v54
    %v1527 = vunpack.c.l.b16 %v55
    %v1528 = vunpack.c.l.b16 %v56
    %v1529 = vunpack.c.l.b16 %v57
    %v1530 = vpack.c.b16 %v1527, %v1526
    %v1531 = vpack.c.b16 %v1529, %v1528
    %v1535 = vsel %vm269, %v1521, 0
    %1537 = vmatprep.subr.bf16.mxu0 0
    %1538 = vmatpush1.bf16.msra.mxu0 %v1530
    %1539 = vmatprep.subr.bf16.mxu0 0
    %1540 = vmatpush1.bf16.msra.mxu0 %v1531
    %1541 = vmatprep.subr.bf16.mxu0 0
    %1542 = vmatpush1.bf16.msra.mxu0 0
    %1543 = vmatprep.subr.bf16.mxu0 0
    %1544 = vmatpush1.bf16.msra.mxu0 0
    %1545 = vmatprep.subr.bf16.mxu0 0
    %1546 = vmatpush1.bf16.msra.mxu0 0
    %1547 = vmatprep.subr.bf16.mxu0 0
    %1548 = vmatpush1.bf16.msra.mxu0 0
    %1549 = vmatprep.subr.bf16.mxu0 0
    %1550 = vmatpush1.bf16.msra.mxu0 0
    %1551 = vmatprep.subr.bf16.mxu0 0
    %1552 = vmatpush1.bf16.msra.mxu0 0
    %1553 = vmatprep.subr.bf16.mxu0 0
    %1554 = vmatpush1.bf16.msra.mxu0 0
    %1555 = vmatprep.subr.bf16.mxu0 0
    %1556 = vmatpush1.bf16.msra.mxu0 0
    %1557 = vmatprep.subr.bf16.mxu0 0
    %1558 = vmatpush1.bf16.msra.mxu0 0
    %1559 = vmatprep.subr.bf16.mxu0 0
    %1560 = vmatpush1.bf16.msra.mxu0 0
    %1561 = vmatprep.subr.bf16.mxu0 0
    %1562 = vmatpush1.bf16.msra.mxu0 0
    %1563 = vmatprep.subr.bf16.mxu0 0
    %1564 = vmatpush1.bf16.msra.mxu0 0
    %1565 = vmatprep.subr.bf16.mxu0 0
    %1566 = vmatpush1.bf16.msra.mxu0 0
    %1567 = vmatprep.subr.bf16.mxu0 0
    %1568 = vmatpush1.bf16.msra.mxu0 0
    %1569 = vmatprep.mubr.bf16.mxu0 0
    %1570 = vmatmul.mubr.bf16.gmra.mrb[0].mxu0 %v1535
    %v1571 = vpop.f32.mrb[0].mxu0
    %v1572 = vadd.f32 %v1518, %v1571
    %v1573 = vpop.f32.mrb[0].mxu0
    %v1574 = vpop.f32.mrb[0].mxu0
    %v1575 = vadd.f32 %v1518, %v1574
    %v1576 = vpop.f32.mrb[0].mxu0
    %1577 = vdwg.mxu0
    %v1578 = vmul.f32 %v1572, 0.5
    %v1579 = vmul.f32 %v1575, 0.5
    %v1580 = vmul.f32 %v1572, %v311
    %v1581 = vmul.f32 %v1575, %v311
    %v1582 = verf.f32.pop %v1580
    %v1583 = verf.f32.pop %v1581
    %v1584 = vadd.f32 %v1582, 1.0
    %v1585 = vadd.f32 %v1583, 1.0
    %v1586 = vmul.f32 %v1578, %v1584
    %v1587 = vmul.f32 %v1579, %v1585
    %v1588 = vpack.c.bf16 %v1587, %v1586
    %v1589 = vlaneseq
    %v1590 = vshrl.u32 %v1589, 7
    %v1591 = vsub.s32 0, %v1590
    %v1592 = vrot.slane %v80, %v1591
    %v1597 = vunpack.c.l.b16 %v62
    %v1598 = vunpack.c.l.b16 %v63
    %v1599 = vunpack.c.l.b16 %v64
    %v1600 = vunpack.c.l.b16 %v65
    %v1601 = vpack.c.b16 %v1598, %v1597
    %v1602 = vpack.c.b16 %v1600, %v1599
    %v1606 = vsel %vm269, %v1588, 0
    %1608 = vmatprep.subr.bf16.mxu0 0
    %1609 = vmatpush1.bf16.msra.mxu0 %v1601
    %1610 = vmatprep.subr.bf16.mxu0 0
    %1611 = vmatpush1.bf16.msra.mxu0 %v1602
    %1612 = vmatprep.subr.bf16.mxu0 0
    %1613 = vmatpush1.bf16.msra.mxu0 0
    %1614 = vmatprep.subr.bf16.mxu0 0
    %1615 = vmatpush1.bf16.msra.mxu0 0
    %1616 = vmatprep.subr.bf16.mxu0 0
    %1617 = vmatpush1.bf16.msra.mxu0 0
    %1618 = vmatprep.subr.bf16.mxu0 0
    %1619 = vmatpush1.bf16.msra.mxu0 0
    %1620 = vmatprep.subr.bf16.mxu0 0
    %1621 = vmatpush1.bf16.msra.mxu0 0
    %1622 = vmatprep.subr.bf16.mxu0 0
    %1623 = vmatpush1.bf16.msra.mxu0 0
    %1624 = vmatprep.subr.bf16.mxu0 0
    %1625 = vmatpush1.bf16.msra.mxu0 0
    %1626 = vmatprep.subr.bf16.mxu0 0
    %1627 = vmatpush1.bf16.msra.mxu0 0
    %1628 = vmatprep.subr.bf16.mxu0 0
    %1629 = vmatpush1.bf16.msra.mxu0 0
    %1630 = vmatprep.subr.bf16.mxu0 0
    %1631 = vmatpush1.bf16.msra.mxu0 0
    %1632 = vmatprep.subr.bf16.mxu0 0
    %1633 = vmatpush1.bf16.msra.mxu0 0
    %1634 = vmatprep.subr.bf16.mxu0 0
    %1635 = vmatpush1.bf16.msra.mxu0 0
    %1636 = vmatprep.subr.bf16.mxu0 0
    %1637 = vmatpush1.bf16.msra.mxu0 0
    %1638 = vmatprep.subr.bf16.mxu0 0
    %1639 = vmatpush1.bf16.msra.mxu0 0
    %1640 = vmatprep.mubr.bf16.mxu0 0
    %1641 = vmatmul.mubr.bf16.gmra.mrb[0].mxu0 %v1606
    %v1642 = vpop.f32.mrb[0].mxu0
    %v1643 = vadd.f32 %v1592, %v1642
    %v1644 = vpop.f32.mrb[0].mxu0
    %v1645 = vpop.f32.mrb[0].mxu0
    %v1646 = vadd.f32 %v1592, %v1645
    %v1647 = vpop.f32.mrb[0].mxu0
    %1648 = vdwg.mxu0
    %1649 = vst [vmem:[#allocation2] sm:$0xff] %v1643
    %1650 = vst [vmem:[#allocation2 + $0x8] sm:$0xff] %v1646
    // Predicated region
    $region22: #{pallas_forward.1} parent=1 // pred_check
      _
    $region23: #{pallas_forward.1} parent=1 // pred_check_branch
      %1652 = sbr.rel (0) target = $region25
    $region24: #{pallas_forward.1} parent=1 // pred_region
      %s1654 = ssub.s32 256, 256
      %1655 = vsyncadd [#allocation3], %s1654
      %s1656 = sshll.u32 [#allocation2], 4
      %s1657 = int_to_ptr.vmem [resolvable:$true] %s1656
      %1662 = dma.vmem_to_hbm [thread:$0]  %s1657, 256, %s5, [#allocation3], 128, 128, 8
    $region25: #{pallas_forward.1} parent=1 // pred_fallthru
      _
    // Predicated region
    $region26: #{pallas_forward.1} parent=1 // pred_check
      _
    $region27: #{pallas_forward.1} parent=1 // pred_check_branch
      %1664 = sbr.rel (0) target = $region29
    $region28: #{pallas_forward.1} parent=1 // pred_region
      %1665 = dma.done [#allocation3], 256
    $region29: #{pallas_forward.1} parent=1 // pred_fallthru
      _
    %1666 = vsyncpa [#allocation3], 1

</llo_original>
